<compile_context>
chip_gen: v5e
topology: v5e:2x2
jax: 0.10.0
libtpu: 0.0.40
codegen_flags: <defaults>
</compile_context>

<pallas_src>
import functools

import jax
import jax.numpy as jnp
from jax.experimental import pallas as pl
from jax.experimental.pallas import tpu as pltpu


# ---------------------------------------------------------------------------
# Kernel: one grid step == (batch element, query tile).
#   qT  = Wq  @ x[:, q_tile]          (hidden, TQ)      (scale folded into Wq)
#   kvT = Wkv @ x                     (2*hidden, N)
#   per head h (statically unrolled):
#     sT  = k_h @ qT_h                (N, TQ)            softmax over axis 0
#     oT  = vT_h @ pT * (1/l)         (Dh, TQ)
#   outT = Wo @ concat_h(oT) + bias   (C, TQ)            lane-dense store
# ---------------------------------------------------------------------------
def _attn_kernel(xq_ref, xkv_ref, wqkv_ref, wo_ref, bo_ref, o_ref,
                 *, heads, dim_head):
    hidden = heads * dim_head

    x_q = xq_ref[0]          # (C, TQ)  query-tile tokens (lane-dense)
    x_kv = xkv_ref[0]        # (C, N)   all tokens (lane-dense)

    # Projections in the transposed layout (features on sublanes, tokens on
    # lanes).  Q only for this query tile; K/V for all keys.
    q_t = jnp.dot(wqkv_ref[0:hidden, :], x_q,
                  preferred_element_type=jnp.float32)            # (hidden, TQ)
    kv_t = jnp.dot(wqkv_ref[hidden:3 * hidden, :], x_kv,
                   preferred_element_type=jnp.float32)           # (2*hidden, N)

    head_outs = []
    for h in range(heads):                       # static unroll (heads=4)
        qh_t = q_t[h * dim_head:(h + 1) * dim_head, :]           # (Dh, TQ)
        kh_t = kv_t[h * dim_head:(h + 1) * dim_head, :]          # (Dh, N)
        vh_t = kv_t[hidden + h * dim_head:hidden + (h + 1) * dim_head, :]

        # One small XLU transpose per head puts the scores matmul in native
        # (M,K)@(K,N) form; bf16 operands take the fast MXU path, f32 acc.
        kh = kh_t.T                                              # (N, Dh)
        s_t = jnp.dot(kh.astype(jnp.bfloat16), qh_t.astype(jnp.bfloat16),
                      preferred_element_type=jnp.float32)        # (N, TQ)

        # softmax over keys == axis 0 (sublanes): VPU-dominant reduction.
        m = jnp.max(s_t, axis=0, keepdims=True)                  # (1, TQ)
        p_t = jnp.exp(s_t - m)                                   # (N, TQ) f32
        l = jnp.sum(p_t, axis=0, keepdims=True)                  # (1, TQ)

        o_t = jnp.dot(vh_t.astype(jnp.bfloat16), p_t.astype(jnp.bfloat16),
                      preferred_element_type=jnp.float32)        # (Dh, TQ)
        # normalize the small (Dh, TQ) output, not the (N, TQ) probabilities;
        # reciprocal lands on the EUP slot (effectively free).
        head_outs.append(o_t * pl.reciprocal(l, approx=True))

    # sublane concat of full-vreg pieces: free (no lane shuffles, no VMEM
    # round trip / masked stores).
    att_t = jnp.concatenate(head_outs, axis=0)                   # (hidden, TQ)

    # single output projection, already in transposed (C, TQ) form -> the
    # store below is lane-dense.
    out_t = jnp.dot(wo_ref[...], att_t,
                    preferred_element_type=jnp.float32)          # (C, TQ)
    o_ref[0] = out_t + bo_ref[...]                               # bias (C, 1)


def simple_attention_pallas(x_nchw, w_qkv, w_out, b_out, *, heads, dim_head,
                            tq=128):
    """x_nchw: (B, C, H, W) f32.  w_qkv: (3*heads*dim_head, C) (1x1 conv, no
    bias).  w_out: (C, heads*dim_head).  b_out: (C,)."""
    B, C, H, W = x_nchw.shape
    N = H * W
    hidden = heads * dim_head
    scale = dim_head ** (-0.5)

    tq = min(tq, N)
    assert N % tq == 0, "H*W must be a multiple of the query tile"

    # NCHW -> (B, C, N): pure reshape (no HBM transpose); tokens on lanes.
    x_tok = x_nchw.reshape(B, C, N)

    # Fused QKV weight stays in its natural (3*hidden, C) layout; softmax
    # scale folded into the Q rows (free, wrapper-side).
    wqkv = jnp.concatenate([w_qkv[0:hidden] * scale, w_qkv[hidden:]], axis=0)
    wo = w_out                     # (C, hidden): already the layout we need
    bo = b_out.reshape(C, 1)

    kernel = functools.partial(_attn_kernel, heads=heads, dim_head=dim_head)

    out_tok = pl.pallas_call(
        kernel,
        out_shape=jax.ShapeDtypeStruct((B, C, N), jnp.float32),
        grid_spec=pltpu.PrefetchScalarGridSpec(
            num_scalar_prefetch=0,
            grid=(B, N // tq),
            in_specs=[
                pl.BlockSpec((1, C, tq), lambda b, qi: (b, 0, qi)),   # x (query tile)
                pl.BlockSpec((1, C, N), lambda b, qi: (b, 0, 0)),     # x (all keys)
                pl.BlockSpec((3 * hidden, C), lambda b, qi: (0, 0)),  # fused Wqkv
                pl.BlockSpec((C, hidden), lambda b, qi: (0, 0)),      # Wo
                pl.BlockSpec((C, 1), lambda b, qi: (0, 0)),           # bias
            ],
            out_specs=pl.BlockSpec((1, C, tq), lambda b, qi: (b, 0, qi)),
        ),
        compiler_params=pltpu.CompilerParams(
            dimension_semantics=("parallel", "parallel")),
    )(x_tok, x_tok, wqkv, wo, bo)

    # (B, C, N) -> NCHW: pure reshape, no transpose.
    return out_tok.reshape(B, C, H, W)


# ---------------------------------------------------------------------------
# Plain-JAX reference (mirrors the PyTorch module) for a correctness check.
# ---------------------------------------------------------------------------
def simple_attention_ref(x, w_qkv, w_out, b_out, *, heads, dim_head):
    B, C, H, W = x.shape
    N = H * W
    qkv = jnp.einsum('bchw,oc->bohw', x, w_qkv)            # 1x1 conv, no bias
    q, k, v = jnp.split(qkv, 3, axis=1)

    def re(t):  # 'b (h c) x y -> b (x y) h c'
        return t.reshape(B, heads, dim_head, N).transpose(0, 3, 1, 2)

    q, k, v = re(q), re(k), re(v)
    scale = dim_head ** (-0.5)
    s = jnp.einsum('bnhd,bmhd->bhnm', q, k) * scale
    p = jax.nn.softmax(s, axis=-1)
    o = jnp.einsum('bhnm,bmhd->bnhd', p, v)
    o = o.transpose(0, 2, 3, 1).reshape(B, heads * dim_head, H, W)
    return jnp.einsum('bchw,oc->bohw', o, w_out) + b_out[None, :, None, None]


if __name__ == "__main__":
    # Small shapes consistent with the module's forward.
    B, dim, H, W = 2, 4, 16, 16
    heads, dim_head = 4, 32
    hidden = heads * dim_head

    key = jax.random.PRNGKey(0)
    kx, kqkv, kwo, kbo = jax.random.split(key, 4)

    x = jax.random.normal(kx, (B, dim, H, W), dtype=jnp.float32)
    # Deterministic synthetic parameters (same shapes as the conv weights).
    w_qkv = jax.random.normal(kqkv, (3 * hidden, dim), dtype=jnp.float32) * 0.1
    w_out = jax.random.normal(kwo, (dim, hidden), dtype=jnp.float32) * 0.1
    b_out = jax.random.normal(kbo, (dim,), dtype=jnp.float32) * 0.1

    out = simple_attention_pallas(x, w_qkv, w_out, b_out,
                                  heads=heads, dim_head=dim_head)
    out = jax.block_until_ready(out)

    ref = simple_attention_ref(x, w_qkv, w_out, b_out,
                               heads=heads, dim_head=dim_head)
    assert out.shape == (B, dim, H, W)
    # tolerance accounts for bf16 MXU operands (f32 accumulation) and the
    # approx (EUP) reciprocal in the softmax normalization
    assert jnp.allclose(out, ref, atol=2e-3, rtol=2e-3), "mismatch vs reference"

    print("KERNEL_OK")
</pallas_src>

<mosaic_0001>
module attributes {stable_mosaic.version = 11 : i64} {
  func.func @_attn_kernel(%arg0: i32, %arg1: i32, %arg2: memref<1x4x128xf32, #tpu.memory_space<vmem>>, %arg3: memref<1x4x256xf32, #tpu.memory_space<vmem>>, %arg4: memref<384x4xf32, #tpu.memory_space<vmem>>, %arg5: memref<4x128xf32, #tpu.memory_space<vmem>>, %arg6: memref<4x1xf32, #tpu.memory_space<vmem>>, %arg7: memref<1x4x128xf32, #tpu.memory_space<vmem>>) attributes {dimension_semantics = [#tpu.dimension_semantics<parallel>, #tpu.dimension_semantics<parallel>], iteration_bounds = array<i64: 2, 2>, scalar_prefetch = 0 : i64, scratch_operands = 0 : i64, tpu.core_type = #tpu.core_type<tc>, window_params = [{transform_indices = @transform_0, window_bounds = array<i64: 1, 4, 128>}, {transform_indices = @transform_1, window_bounds = array<i64: 1, 4, 256>}, {pipeline_mode = #tpu.pipeline_mode<synchronous>, transform_indices = @transform_2, window_bounds = array<i64: 384, 4>}, {pipeline_mode = #tpu.pipeline_mode<synchronous>, transform_indices = @transform_3, window_bounds = array<i64: 4, 128>}, {pipeline_mode = #tpu.pipeline_mode<synchronous>, transform_indices = @transform_4, window_bounds = array<i64: 4, 1>}, {transform_indices = @transform_5, window_bounds = array<i64: 1, 4, 128>}]} {
    %c0 = arith.constant 0 : index
    %c0_0 = arith.constant 0 : index
    %c0_1 = arith.constant 0 : index
    %0 = vector.load %arg2[%c0, %c0_0, %c0_1] : memref<1x4x128xf32, #tpu.memory_space<vmem>>, vector<1x4x128xf32>
    %1 = vector.shape_cast %0 : vector<1x4x128xf32> to vector<4x128xf32>
    %c0_2 = arith.constant 0 : index
    %c0_3 = arith.constant 0 : index
    %c0_4 = arith.constant 0 : index
    %2 = vector.load %arg3[%c0_2, %c0_3, %c0_4] : memref<1x4x256xf32, #tpu.memory_space<vmem>>, vector<1x4x256xf32>
    %3 = vector.shape_cast %2 : vector<1x4x256xf32> to vector<4x256xf32>
    %c0_5 = arith.constant 0 : index
    %c0_6 = arith.constant 0 : index
    %4 = vector.load %arg4[%c0_5, %c0_6] : memref<384x4xf32, #tpu.memory_space<vmem>>, vector<128x4xf32>
    %cst = arith.constant dense<0.000000e+00> : vector<128x128xf32>
    %5 = tpu.matmul %4, %1, %cst {dimension_numbers = #tpu.dot_dimension_numbers<[1], [0], [0], [1], [0, 0, 1, 1], [], []>} : vector<128x4xf32>, vector<4x128xf32>, vector<128x128xf32> -> vector<128x128xf32>
    %c128 = arith.constant 128 : index
    %c0_7 = arith.constant 0 : index
    %6 = vector.load %arg4[%c128, %c0_7] : memref<384x4xf32, #tpu.memory_space<vmem>>, vector<256x4xf32>
    %cst_8 = arith.constant dense<0.000000e+00> : vector<256x256xf32>
    %7 = tpu.matmul %6, %3, %cst_8 {dimension_numbers = #tpu.dot_dimension_numbers<[1], [0], [0], [1], [0, 0, 1, 1], [], []>} : vector<256x4xf32>, vector<4x256xf32>, vector<256x256xf32> -> vector<256x256xf32>
    %8 = vector.extract_strided_slice %5 {offsets = [0, 0], sizes = [32, 128], strides = [1, 1]} : vector<128x128xf32> to vector<32x128xf32>
    %9 = vector.extract_strided_slice %7 {offsets = [0, 0], sizes = [32, 256], strides = [1, 1]} : vector<256x256xf32> to vector<32x256xf32>
    %10 = vector.extract_strided_slice %7 {offsets = [128, 0], sizes = [32, 256], strides = [1, 1]} : vector<256x256xf32> to vector<32x256xf32>
    %11 = tpu.transpose %9, [1, 0] : vector<32x256xf32> -> vector<256x32xf32>
    %12 = arith.truncf %11 : vector<256x32xf32> to vector<256x32xbf16>
    %13 = arith.truncf %8 : vector<32x128xf32> to vector<32x128xbf16>
    %cst_9 = arith.constant dense<0.000000e+00> : vector<256x128xf32>
    %14 = tpu.matmul %12, %13, %cst_9 {dimension_numbers = #tpu.dot_dimension_numbers<[1], [0], [0], [1], [0, 0, 1, 1], [], []>} : vector<256x32xbf16>, vector<32x128xbf16>, vector<256x128xf32> -> vector<256x128xf32>
    %cst_10 = arith.constant dense<0xFF800000> : vector<128xf32>
    %15 = vector.multi_reduction <maximumf>, %14, %cst_10 [0] : vector<256x128xf32> to vector<128xf32>
    %16 = vector.shape_cast %15 : vector<128xf32> to vector<1x128xf32>
    %17 = vector.broadcast %16 : vector<1x128xf32> to vector<256x128xf32>
    %18 = arith.subf %14, %17 : vector<256x128xf32>
    %19 = math.exp %18 : vector<256x128xf32>
    %cst_11 = arith.constant dense<0.000000e+00> : vector<128xf32>
    %20 = vector.multi_reduction <add>, %19, %cst_11 [0] : vector<256x128xf32> to vector<128xf32>
    %21 = vector.shape_cast %20 : vector<128xf32> to vector<1x128xf32>
    %22 = arith.truncf %10 : vector<32x256xf32> to vector<32x256xbf16>
    %23 = arith.truncf %19 : vector<256x128xf32> to vector<256x128xbf16>
    %cst_12 = arith.constant dense<0.000000e+00> : vector<32x128xf32>
    %24 = tpu.matmul %22, %23, %cst_12 {dimension_numbers = #tpu.dot_dimension_numbers<[1], [0], [0], [1], [0, 0, 1, 1], [], []>} : vector<32x256xbf16>, vector<256x128xbf16>, vector<32x128xf32> -> vector<32x128xf32>
    %25 = tpu.reciprocal %21 {approx = true} : vector<1x128xf32> -> vector<1x128xf32>
    %26 = vector.broadcast %25 : vector<1x128xf32> to vector<32x128xf32>
    %27 = arith.mulf %24, %26 : vector<32x128xf32>
    %28 = vector.extract_strided_slice %5 {offsets = [32, 0], sizes = [32, 128], strides = [1, 1]} : vector<128x128xf32> to vector<32x128xf32>
    %29 = vector.extract_strided_slice %7 {offsets = [32, 0], sizes = [32, 256], strides = [1, 1]} : vector<256x256xf32> to vector<32x256xf32>
    %30 = vector.extract_strided_slice %7 {offsets = [160, 0], sizes = [32, 256], strides = [1, 1]} : vector<256x256xf32> to vector<32x256xf32>
    %31 = tpu.transpose %29, [1, 0] : vector<32x256xf32> -> vector<256x32xf32>
    %32 = arith.truncf %31 : vector<256x32xf32> to vector<256x32xbf16>
    %33 = arith.truncf %28 : vector<32x128xf32> to vector<32x128xbf16>
    %cst_13 = arith.constant dense<0.000000e+00> : vector<256x128xf32>
    %34 = tpu.matmul %32, %33, %cst_13 {dimension_numbers = #tpu.dot_dimension_numbers<[1], [0], [0], [1], [0, 0, 1, 1], [], []>} : vector<256x32xbf16>, vector<32x128xbf16>, vector<256x128xf32> -> vector<256x128xf32>
    %cst_14 = arith.constant dense<0xFF800000> : vector<128xf32>
    %35 = vector.multi_reduction <maximumf>, %34, %cst_14 [0] : vector<256x128xf32> to vector<128xf32>
    %36 = vector.shape_cast %35 : vector<128xf32> to vector<1x128xf32>
    %37 = vector.broadcast %36 : vector<1x128xf32> to vector<256x128xf32>
    %38 = arith.subf %34, %37 : vector<256x128xf32>
    %39 = math.exp %38 : vector<256x128xf32>
    %cst_15 = arith.constant dense<0.000000e+00> : vector<128xf32>
    %40 = vector.multi_reduction <add>, %39, %cst_15 [0] : vector<256x128xf32> to vector<128xf32>
    %41 = vector.shape_cast %40 : vector<128xf32> to vector<1x128xf32>
    %42 = arith.truncf %30 : vector<32x256xf32> to vector<32x256xbf16>
    %43 = arith.truncf %39 : vector<256x128xf32> to vector<256x128xbf16>
    %cst_16 = arith.constant dense<0.000000e+00> : vector<32x128xf32>
    %44 = tpu.matmul %42, %43, %cst_16 {dimension_numbers = #tpu.dot_dimension_numbers<[1], [0], [0], [1], [0, 0, 1, 1], [], []>} : vector<32x256xbf16>, vector<256x128xbf16>, vector<32x128xf32> -> vector<32x128xf32>
    %45 = tpu.reciprocal %41 {approx = true} : vector<1x128xf32> -> vector<1x128xf32>
    %46 = vector.broadcast %45 : vector<1x128xf32> to vector<32x128xf32>
    %47 = arith.mulf %44, %46 : vector<32x128xf32>
    %48 = vector.extract_strided_slice %5 {offsets = [64, 0], sizes = [32, 128], strides = [1, 1]} : vector<128x128xf32> to vector<32x128xf32>
    %49 = vector.extract_strided_slice %7 {offsets = [64, 0], sizes = [32, 256], strides = [1, 1]} : vector<256x256xf32> to vector<32x256xf32>
    %50 = vector.extract_strided_slice %7 {offsets = [192, 0], sizes = [32, 256], strides = [1, 1]} : vector<256x256xf32> to vector<32x256xf32>
    %51 = tpu.transpose %49, [1, 0] : vector<32x256xf32> -> vector<256x32xf32>
    %52 = arith.truncf %51 : vector<256x32xf32> to vector<256x32xbf16>
    %53 = arith.truncf %48 : vector<32x128xf32> to vector<32x128xbf16>
    %cst_17 = arith.constant dense<0.000000e+00> : vector<256x128xf32>
    %54 = tpu.matmul %52, %53, %cst_17 {dimension_numbers = #tpu.dot_dimension_numbers<[1], [0], [0], [1], [0, 0, 1, 1], [], []>} : vector<256x32xbf16>, vector<32x128xbf16>, vector<256x128xf32> -> vector<256x128xf32>
    %cst_18 = arith.constant dense<0xFF800000> : vector<128xf32>
    %55 = vector.multi_reduction <maximumf>, %54, %cst_18 [0] : vector<256x128xf32> to vector<128xf32>
    %56 = vector.shape_cast %55 : vector<128xf32> to vector<1x128xf32>
    %57 = vector.broadcast %56 : vector<1x128xf32> to vector<256x128xf32>
    %58 = arith.subf %54, %57 : vector<256x128xf32>
    %59 = math.exp %58 : vector<256x128xf32>
    %cst_19 = arith.constant dense<0.000000e+00> : vector<128xf32>
    %60 = vector.multi_reduction <add>, %59, %cst_19 [0] : vector<256x128xf32> to vector<128xf32>
    %61 = vector.shape_cast %60 : vector<128xf32> to vector<1x128xf32>
    %62 = arith.truncf %50 : vector<32x256xf32> to vector<32x256xbf16>
    %63 = arith.truncf %59 : vector<256x128xf32> to vector<256x128xbf16>
    %cst_20 = arith.constant dense<0.000000e+00> : vector<32x128xf32>
    %64 = tpu.matmul %62, %63, %cst_20 {dimension_numbers = #tpu.dot_dimension_numbers<[1], [0], [0], [1], [0, 0, 1, 1], [], []>} : vector<32x256xbf16>, vector<256x128xbf16>, vector<32x128xf32> -> vector<32x128xf32>
    %65 = tpu.reciprocal %61 {approx = true} : vector<1x128xf32> -> vector<1x128xf32>
    %66 = vector.broadcast %65 : vector<1x128xf32> to vector<32x128xf32>
    %67 = arith.mulf %64, %66 : vector<32x128xf32>
    %68 = vector.extract_strided_slice %5 {offsets = [96, 0], sizes = [32, 128], strides = [1, 1]} : vector<128x128xf32> to vector<32x128xf32>
    %69 = vector.extract_strided_slice %7 {offsets = [96, 0], sizes = [32, 256], strides = [1, 1]} : vector<256x256xf32> to vector<32x256xf32>
    %70 = vector.extract_strided_slice %7 {offsets = [224, 0], sizes = [32, 256], strides = [1, 1]} : vector<256x256xf32> to vector<32x256xf32>
    %71 = tpu.transpose %69, [1, 0] : vector<32x256xf32> -> vector<256x32xf32>
    %72 = arith.truncf %71 : vector<256x32xf32> to vector<256x32xbf16>
    %73 = arith.truncf %68 : vector<32x128xf32> to vector<32x128xbf16>
    %cst_21 = arith.constant dense<0.000000e+00> : vector<256x128xf32>
    %74 = tpu.matmul %72, %73, %cst_21 {dimension_numbers = #tpu.dot_dimension_numbers<[1], [0], [0], [1], [0, 0, 1, 1], [], []>} : vector<256x32xbf16>, vector<32x128xbf16>, vector<256x128xf32> -> vector<256x128xf32>
    %cst_22 = arith.constant dense<0xFF800000> : vector<128xf32>
    %75 = vector.multi_reduction <maximumf>, %74, %cst_22 [0] : vector<256x128xf32> to vector<128xf32>
    %76 = vector.shape_cast %75 : vector<128xf32> to vector<1x128xf32>
    %77 = vector.broadcast %76 : vector<1x128xf32> to vector<256x128xf32>
    %78 = arith.subf %74, %77 : vector<256x128xf32>
    %79 = math.exp %78 : vector<256x128xf32>
    %cst_23 = arith.constant dense<0.000000e+00> : vector<128xf32>
    %80 = vector.multi_reduction <add>, %79, %cst_23 [0] : vector<256x128xf32> to vector<128xf32>
    %81 = vector.shape_cast %80 : vector<128xf32> to vector<1x128xf32>
    %82 = arith.truncf %70 : vector<32x256xf32> to vector<32x256xbf16>
    %83 = arith.truncf %79 : vector<256x128xf32> to vector<256x128xbf16>
    %cst_24 = arith.constant dense<0.000000e+00> : vector<32x128xf32>
    %84 = tpu.matmul %82, %83, %cst_24 {dimension_numbers = #tpu.dot_dimension_numbers<[1], [0], [0], [1], [0, 0, 1, 1], [], []>} : vector<32x256xbf16>, vector<256x128xbf16>, vector<32x128xf32> -> vector<32x128xf32>
    %85 = tpu.reciprocal %81 {approx = true} : vector<1x128xf32> -> vector<1x128xf32>
    %86 = vector.broadcast %85 : vector<1x128xf32> to vector<32x128xf32>
    %87 = arith.mulf %84, %86 : vector<32x128xf32>
    %88 = tpu.concatenate %27, %47, %67, %87 in 0 : vector<32x128xf32>, vector<32x128xf32>, vector<32x128xf32>, vector<32x128xf32> -> vector<128x128xf32>
    %c0_25 = arith.constant 0 : index
    %c0_26 = arith.constant 0 : index
    %89 = vector.load %arg5[%c0_25, %c0_26] : memref<4x128xf32, #tpu.memory_space<vmem>>, vector<4x128xf32>
    %cst_27 = arith.constant dense<0.000000e+00> : vector<4x128xf32>
    %90 = tpu.matmul %89, %88, %cst_27 {dimension_numbers = #tpu.dot_dimension_numbers<[1], [0], [0], [1], [0, 0, 1, 1], [], []>} : vector<4x128xf32>, vector<128x128xf32>, vector<4x128xf32> -> vector<4x128xf32>
    %c0_28 = arith.constant 0 : index
    %c0_29 = arith.constant 0 : index
    %91 = vector.load %arg6[%c0_28, %c0_29] : memref<4x1xf32, #tpu.memory_space<vmem>>, vector<4x1xf32>
    %92 = vector.broadcast %91 : vector<4x1xf32> to vector<4x128xf32>
    %93 = arith.addf %90, %92 : vector<4x128xf32>
    %c0_30 = arith.constant 0 : index
    %c0_31 = arith.constant 0 : index
    %c0_32 = arith.constant 0 : index
    %94 = vector.load %arg7[%c0_30, %c0_31, %c0_32] : memref<1x4x128xf32, #tpu.memory_space<vmem>>, vector<1x4x128xf32>
    %95 = vector.shape_cast %94 : vector<1x4x128xf32> to vector<4x128xf32>
    %96 = vector.shape_cast %93 : vector<4x128xf32> to vector<1x4x128xf32>
    tpu.vector_store %arg7[%c0_30, %c0_31, %c0_32], %96 {strides = array<i32>} : memref<1x4x128xf32, #tpu.memory_space<vmem>>, vector<1x4x128xf32>,
    return
  }
  func.func @transform_0(%arg0: i32, %arg1: i32) -> (i32, i32, i32) {
    %c0_i32 = arith.constant 0 : i32
    %c0_i32_0 = arith.constant 0 : i32
    return %arg0, %c0_i32, %arg1 : i32, i32, i32
  }
  func.func @transform_1(%arg0: i32, %arg1: i32) -> (i32, i32, i32) {
    %c0_i32 = arith.constant 0 : i32
    %c0_i32_0 = arith.constant 0 : i32
    %c0_i32_1 = arith.constant 0 : i32
    return %arg0, %c0_i32, %c0_i32_0 : i32, i32, i32
  }
  func.func @transform_2(%arg0: i32, %arg1: i32) -> (i32, i32) {
    %c0_i32 = arith.constant 0 : i32
    %c0_i32_0 = arith.constant 0 : i32
    %c0_i32_1 = arith.constant 0 : i32
    return %c0_i32, %c0_i32_0 : i32, i32
  }
  func.func @transform_3(%arg0: i32, %arg1: i32) -> (i32, i32) {
    %c0_i32 = arith.constant 0 : i32
    %c0_i32_0 = arith.constant 0 : i32
    %c0_i32_1 = arith.constant 0 : i32
    return %c0_i32, %c0_i32_0 : i32, i32
  }
  func.func @transform_4(%arg0: i32, %arg1: i32) -> (i32, i32) {
    %c0_i32 = arith.constant 0 : i32
    %c0_i32_0 = arith.constant 0 : i32
    %c0_i32_1 = arith.constant 0 : i32
    return %c0_i32, %c0_i32_0 : i32, i32
  }
  func.func @transform_5(%arg0: i32, %arg1: i32) -> (i32, i32, i32) {
    %c0_i32 = arith.constant 0 : i32
    %c0_i32_0 = arith.constant 0 : i32
    return %arg0, %c0_i32, %arg1 : i32, i32, i32
  }
}

</mosaic_0001>

<llo_original>
// kernel: tpu_custom_call.1
$region0: #{tpu_custom_call.1}
  #allocation0 [shape = 'u32[]', space=smem, size = 0x4, offset = 0x4, fixed_abs, tag = 'smem constant byte address 0x4 - core index']
  #allocation1 [shape = 'u32[72,128]{1,0:T(1,128)}', space=vmem, size = 0x9000, scoped, tag = 'internal scratch']
  %s0 = inlined_call_operand.vmem [shape: f32[2,4,256], index: 0, kind: input, shape index: {}]
  %s1 = inlined_call_operand.vmem [shape: f32[2,4,256], index: 1, kind: input, shape index: {}]
  %s2 = inlined_call_operand.vmem [shape: f32[384,4], index: 2, kind: input, shape index: {}]
  %s3 = inlined_call_operand.vmem [shape: f32[4,128], index: 3, kind: input, shape index: {}]
  %s4 = inlined_call_operand.vmem [shape: f32[4,1], index: 4, kind: input, shape index: {}]
  %s5 = inlined_call_operand.hbm [shape: f32[2,4,256], index: 5, kind: output, shape index: {}]
  %s6 = sld [smem:[#allocation0]]
  $region53: #{tpu_custom_call.1} parent=0
    _
  %s8 = ssub.s32 1, %s6
  %s9 = scalar_select 0, %s8, %s6
  $region1: #{tpu_custom_call.1} parent=0
    #allocation2 [shape = 'u8[4096]{0}', space=vmem, size = 0x1000, scoped, tag = 'output window, operand 0']
    #allocation3 [shape = 's32[2]{0}', space=sflag, size = 0x8, scoped, tag = 'scoped memory for tpu_custom_call.1']
    %10 = vsyncpa [#allocation3], 0
    %s11 = scalar_lea.sflag [#allocation3], 1
    %12 = vsyncpa %s11, 0
    loop: start=0, step=1, limit=6
    $region2: #{tpu_custom_call.1} parent=1 // loop_pre_header
      _
    $region3: #{tpu_custom_call.1} parent=1 // loop_header
      %s14 = sphi 0, %s18
      %p15 = scmp.ge.s32.totalorder %s14, 6
      %s21 = sphi 0, %s33
      %s22 = sphi 0, %s29
      %s23 = sphi 0, %s21
      %s24 = sphi 0, %s22
      %s25 = sphi 0, %s23
      %s26 = sphi 0, %s24
      %s38 = sphi 0, %s40
      %s41 = sphi 0, %s38
      %s42 = sphi 0, %s41
      %s58 = sphi 0, %s42
      %s64 = sphi 0, %s66
      %s67 = sphi 0, %s64
      %s68 = sphi 0, %s67
      %s84 = sphi 0, %s68
      %s88 = sphi 0, %s88
      %s90 = sphi 0, %s88
      %s91 = sphi 0, %s90
      %s105 = sphi 0, %s91
      %s109 = sphi 0, %s109
      %s111 = sphi 0, %s109
      %s112 = sphi 0, %s111
      %s126 = sphi 0, %s112
      %s130 = sphi 0, %s130
      %s132 = sphi 0, %s130
      %s133 = sphi 0, %s132
      %s147 = sphi 0, %s133
      %s155 = sphi 0, %s157
      %s158 = sphi 0, %s155
      %s159 = sphi 0, %s158
      %s175 = sphi 0, %s159
    $region4: #{tpu_custom_call.1} parent=1 // loop_header_branch
      %17 = sbr.rel (%p15) target = $region8
    $region5: #{tpu_custom_call.1} parent=1 // loop_body
      %s19 = ssub.s32 %s14, 1
      %s20 = ssub.s32 %s14, 2
      %s27 = sadd.s32 1, %s22
      %p28 = scmp.ge.s32.totalorder %s27, 2
      %s29 = scalar_select %p28, 0, %s27
      %s30 = sadd.s32 1, %s21
      %s31 = scalar_select %p28, %s30, %s21
      %p32 = scmp.ge.s32.totalorder %s31, 2
      %s33 = scalar_select %p32, 0, %s31
      %s34 = ssub.s32 %s21, %s33
      %s35 = ssub.s32 %s22, %s29
      %s36 = sor.u32 %s34, %s35
      %p37 = scmp.eq.s32.totalorder %s36, 0
      %s39 = sadd.s32 %s38, 1
      %s40 = scalar_select %p37, %s38, %s39
      %p43 = pneg %p37
      %p44 = scmp.eq.s32.totalorder %s14, 3
      %p45 = por %p43, %p44
      %p46 = scmp.ne.s32.totalorder %s38, %s41
      %p47 = scmp.eq.s32.totalorder %s14, 0
      %p48 = por %p46, %p47
      %p49 = scmp.ne.s32.totalorder %s38, %s41
      %p50 = scmp.eq.s32.totalorder %s19, 3
      %p51 = por %p49, %p50
      %p52 = scmp.ne.s32.totalorder %s41, %s42
      %p53 = scmp.eq.s32.totalorder %s19, 0
      %p54 = por %p52, %p53
      %p55 = scmp.ne.s32.totalorder %s41, %s42
      %p56 = scmp.eq.s32.totalorder %s20, 3
      %p57 = por %p55, %p56
      %p59 = scmp.ne.s32.totalorder %s42, %s58
      %p60 = scmp.eq.s32.totalorder %s20, 0
      %p61 = por %p59, %p60
      %s62 = ssub.s32 %s21, %s33
      %p63 = scmp.eq.s32.totalorder %s62, 0
      %s65 = sadd.s32 %s64, 1
      %s66 = scalar_select %p63, %s64, %s65
      %p69 = pneg %p63
      %p70 = scmp.eq.s32.totalorder %s14, 3
      %p71 = por %p69, %p70
      %p72 = scmp.ne.s32.totalorder %s64, %s67
      %p73 = scmp.eq.s32.totalorder %s14, 0
      %p74 = por %p72, %p73
      %p75 = scmp.ne.s32.totalorder %s64, %s67
      %p76 = scmp.eq.s32.totalorder %s19, 3
      %p77 = por %p75, %p76
      %p78 = scmp.ne.s32.totalorder %s67, %s68
      %p79 = scmp.eq.s32.totalorder %s19, 0
      %p80 = por %p78, %p79
      %p81 = scmp.ne.s32.totalorder %s67, %s68
      %p82 = scmp.eq.s32.totalorder %s20, 3
      %p83 = por %p81, %p82
      %p85 = scmp.ne.s32.totalorder %s68, %s84
      %p86 = scmp.eq.s32.totalorder %s20, 0
      %p87 = por %p85, %p86
      %s89 = sadd.s32 %s88, 1
      %p92 = scmp.eq.s32.totalorder %s14, 3
      %p93 = scmp.ne.s32.totalorder %s88, %s90
      %p94 = scmp.eq.s32.totalorder %s14, 0
      %p95 = por %p93, %p94
      %p96 = scmp.ne.s32.totalorder %s88, %s90
      %p97 = scmp.eq.s32.totalorder %s19, 3
      %p98 = por %p96, %p97
      %p99 = scmp.ne.s32.totalorder %s90, %s91
      %p100 = scmp.eq.s32.totalorder %s19, 0
      %p101 = por %p99, %p100
      %p102 = scmp.ne.s32.totalorder %s90, %s91
      %p103 = scmp.eq.s32.totalorder %s20, 3
      %p104 = por %p102, %p103
      %p106 = scmp.ne.s32.totalorder %s91, %s105
      %p107 = scmp.eq.s32.totalorder %s20, 0
      %p108 = por %p106, %p107
      %s110 = sadd.s32 %s109, 1
      %p113 = scmp.eq.s32.totalorder %s14, 3
      %p114 = scmp.ne.s32.totalorder %s109, %s111
      %p115 = scmp.eq.s32.totalorder %s14, 0
      %p116 = por %p114, %p115
      %p117 = scmp.ne.s32.totalorder %s109, %s111
      %p118 = scmp.eq.s32.totalorder %s19, 3
      %p119 = por %p117, %p118
      %p120 = scmp.ne.s32.totalorder %s111, %s112
      %p121 = scmp.eq.s32.totalorder %s19, 0
      %p122 = por %p120, %p121
      %p123 = scmp.ne.s32.totalorder %s111, %s112
      %p124 = scmp.eq.s32.totalorder %s20, 3
      %p125 = por %p123, %p124
      %p127 = scmp.ne.s32.totalorder %s112, %s126
      %p128 = scmp.eq.s32.totalorder %s20, 0
      %p129 = por %p127, %p128
      %s131 = sadd.s32 %s130, 1
      %p134 = scmp.eq.s32.totalorder %s14, 3
      %p135 = scmp.ne.s32.totalorder %s130, %s132
      %p136 = scmp.eq.s32.totalorder %s14, 0
      %p137 = por %p135, %p136
      %p138 = scmp.ne.s32.totalorder %s130, %s132
      %p139 = scmp.eq.s32.totalorder %s19, 3
      %p140 = por %p138, %p139
      %p141 = scmp.ne.s32.totalorder %s132, %s133
      %p142 = scmp.eq.s32.totalorder %s19, 0
      %p143 = por %p141, %p142
      %p144 = scmp.ne.s32.totalorder %s132, %s133
      %p145 = scmp.eq.s32.totalorder %s20, 3
      %p146 = por %p144, %p145
      %p148 = scmp.ne.s32.totalorder %s133, %s147
      %p149 = scmp.eq.s32.totalorder %s20, 0
      %p150 = por %p148, %p149
      %s151 = ssub.s32 %s21, %s33
      %s152 = ssub.s32 %s22, %s29
      %s153 = sor.u32 %s151, %s152
      %p154 = scmp.eq.s32.totalorder %s153, 0
      %s156 = sadd.s32 %s155, 1
      %s157 = scalar_select %p154, %s155, %s156
      %p160 = pneg %p154
      %p161 = scmp.eq.s32.totalorder %s14, 3
      %p162 = por %p160, %p161
      %p163 = scmp.ne.s32.totalorder %s155, %s158
      %p164 = scmp.eq.s32.totalorder %s14, 0
      %p165 = por %p163, %p164
      %p166 = scmp.ne.s32.totalorder %s155, %s158
      %p167 = scmp.eq.s32.totalorder %s19, 3
      %p168 = por %p166, %p167
      %p169 = scmp.ne.s32.totalorder %s158, %s159
      %p170 = scmp.eq.s32.totalorder %s19, 0
      %p171 = por %p169, %p170
      %p172 = scmp.ne.s32.totalorder %s158, %s159
      %p173 = scmp.eq.s32.totalorder %s20, 3
      %p174 = por %p172, %p173
      %p176 = scmp.ne.s32.totalorder %s159, %s175
      %p177 = scmp.eq.s32.totalorder %s20, 0
      %p178 = por %p176, %p177
      %p179 = scmp.le.s32.totalorder 1, %s14
      %p180 = scmp.lt.s32.totalorder %s14, 5
      %p181 = pnand %p179, %p180
      %p182 = pneg %p181
      // Predicated region
      $region9: #{tpu_custom_call.1} parent=5 // pred_check
        _
      $region10: #{tpu_custom_call.1} parent=5 // pred_check_branch
        %184 = sbr.rel (%p181) target = $region12
      $region11: #{tpu_custom_call.1} parent=5 // pred_region
        %s185 = ssub.s32 %s14, 1
        // Predicated region
        $region13: #{tpu_custom_call.1} parent=11 // pred_check
          %p186 = pneg %p101
        $region14: #{tpu_custom_call.1} parent=11 // pred_check_branch
          %188 = sbr.rel (%p186) target = $region16
        $region15: #{tpu_custom_call.1} parent=11 // pred_region
          _
        $region16: #{tpu_custom_call.1} parent=11 // pred_fallthru
          _
        // Predicated region
        $region17: #{tpu_custom_call.1} parent=11 // pred_check
          %p189 = pneg %p122
        $region18: #{tpu_custom_call.1} parent=11 // pred_check_branch
          %191 = sbr.rel (%p189) target = $region20
        $region19: #{tpu_custom_call.1} parent=11 // pred_region
          _
        $region20: #{tpu_custom_call.1} parent=11 // pred_fallthru
          _
        // Predicated region
        $region21: #{tpu_custom_call.1} parent=11 // pred_check
          %p192 = pneg %p143
        $region22: #{tpu_custom_call.1} parent=11 // pred_check_branch
          %194 = sbr.rel (%p192) target = $region24
        $region23: #{tpu_custom_call.1} parent=11 // pred_region
          _
        $region24: #{tpu_custom_call.1} parent=11 // pred_fallthru
          _
      $region12: #{tpu_custom_call.1} parent=5 // pred_fallthru
        _
      %p195 = scmp.lt.s32.totalorder %s14, 4
      // Predicated region
      $region25: #{tpu_custom_call.1} parent=5 // pred_check
        %p196 = pneg %p195
      $region26: #{tpu_custom_call.1} parent=5 // pred_check_branch
        %198 = sbr.rel (%p196) target = $region28
      $region27: #{tpu_custom_call.1} parent=5 // pred_region
        // Predicated region
        $region29: #{tpu_custom_call.1} parent=27 // pred_check
          %p199 = pneg %p48
        $region30: #{tpu_custom_call.1} parent=27 // pred_check_branch
          %201 = sbr.rel (%p199) target = $region32
        $region31: #{tpu_custom_call.1} parent=27 // pred_region
          %p202 = scmp.lt.s32.totalorder %s21, 1
          %s203 = scalar_select %p202, %s21, 1
          %p204 = scmp.lt.s32.totalorder %s22, 1
          %s205 = scalar_select %p204, %s22, 1
          %s206 = smul.addr %s203, 2
          %s207 = sadd.s32 %s205, %s206
          %s208 = smul.addr %s207, 4
          %s209 = scalar_lea.vmem %s0, %s208
        $region32: #{tpu_custom_call.1} parent=27 // pred_fallthru
          _
        // Predicated region
        $region33: #{tpu_custom_call.1} parent=27 // pred_check
          %p210 = pneg %p74
        $region34: #{tpu_custom_call.1} parent=27 // pred_check_branch
          %212 = sbr.rel (%p210) target = $region36
        $region35: #{tpu_custom_call.1} parent=27 // pred_region
          %p213 = scmp.lt.s32.totalorder %s21, 1
          %s214 = scalar_select %p213, %s21, 1
          %s215 = smul.addr %s214, 2
          %s216 = smul.addr %s215, 4
          %s217 = scalar_lea.vmem %s1, %s216
        $region36: #{tpu_custom_call.1} parent=27 // pred_fallthru
          _
      $region28: #{tpu_custom_call.1} parent=5 // pred_fallthru
        _
      %p218 = scmp.le.s32.totalorder 1, %s14
      %p219 = scmp.lt.s32.totalorder %s14, 5
      %p220 = pnand %p218, %p219
      %p221 = pneg %p220
      // Predicated region
      $region37: #{tpu_custom_call.1} parent=5 // pred_check
        _
      $region38: #{tpu_custom_call.1} parent=5 // pred_check_branch
        %223 = sbr.rel (%p220) target = $region40
      $region39: #{tpu_custom_call.1} parent=5 // pred_region
        %s224 = ssub.s32 %s14, 1
        %p225 = scmp.lt.s32.totalorder %s23, 1
        %s226 = scalar_select %p225, %s23, 1
        %p227 = scmp.lt.s32.totalorder %s24, 1
        %s228 = scalar_select %p227, %s24, 1
        %s229 = smul.addr %s226, 2
        %s230 = sadd.s32 %s228, %s229
        %s231 = smul.addr %s230, 4
        %s232 = scalar_lea.vmem %s0, %s231
        %p233 = pneg %p54
        %p234 = pneg %p51
        %p235 = scmp.lt.s32.totalorder %s23, 1
        %s236 = scalar_select %p235, %s23, 1
        %s237 = smul.addr %s236, 2
        %s238 = smul.addr %s237, 4
        %s239 = scalar_lea.vmem %s1, %s238
        %p240 = pneg %p80
        %p241 = pneg %p77
        %p242 = pneg %p101
        %p243 = pneg %p98
        %p244 = pneg %p122
        %p245 = pneg %p119
        %p246 = pneg %p143
        %p247 = pneg %p140
        %p248 = pneg %p171
        %p249 = pneg %p168
        %s250 = sand.u32 %s158, 1
        %s251 = scalar_lea.sflag [#allocation3], %s250
        %s252 = sand.u32 %s158, 1
        %s253 = smul.addr %s252, 4
        %s254 = scalar_lea.vmem [#allocation2], %s253
        %p255 = scmp.lt.s32.totalorder %s23, 1
        %s256 = scalar_select %p255, %s23, 1
        %p257 = scmp.lt.s32.totalorder %s24, 1
        %s258 = scalar_select %p257, %s24, 1
        %s259 = smul.addr %s256, 2
        %s260 = sadd.s32 %s258, %s259
        %s261 = smul.addr %s260, 4
        %s262 = scalar_lea.vmem %s0, %s261
        %p263 = scmp.lt.s32.totalorder %s23, 1
        %s264 = scalar_select %p263, %s23, 1
        %s265 = smul.addr %s264, 2
        %s266 = smul.addr %s265, 4
        %s267 = scalar_lea.vmem %s1, %s266
        %v269 = vld [vmem:[%s262] sm:$0xf]
        %v270 = vld [vmem:[%s267] sm:$0xff]
        %v271 = vld [vmem:[%s2] sm:$0xff]
        %v272 = vld [vmem:[%s2 + $0x8] sm:$0xff]
        %v273 = vld [vmem:[%s2 + $0x10] sm:$0xff]
        %v274 = vld [vmem:[%s2 + $0x18] sm:$0xff]
        %v275 = vld [vmem:[%s2 + $0x20] sm:$0xff]
        %v276 = vld [vmem:[%s2 + $0x28] sm:$0xff]
        %v277 = vld [vmem:[%s2 + $0x30] sm:$0xff]
        %v278 = vld [vmem:[%s2 + $0x38] sm:$0xff]
        %v279 = vld [vmem:[%s2 + $0x40] sm:$0xff]
        %v280 = vld [vmem:[%s2 + $0x48] sm:$0xff]
        %v281 = vld [vmem:[%s2 + $0x50] sm:$0xff]
        %v282 = vld [vmem:[%s2 + $0x58] sm:$0xff]
        %v283 = vld [vmem:[%s2 + $0x60] sm:$0xff]
        %v284 = vld [vmem:[%s2 + $0x68] sm:$0xff]
        %v285 = vld [vmem:[%s2 + $0x70] sm:$0xff]
        %v286 = vld [vmem:[%s2 + $0x78] sm:$0xff]
        %vm287 = vcmask 31744
        %v289 = vsel %vm287, %v271, 0
        %v292 = vsel %vm287, %v272, 0
        %v295 = vsel %vm287, %v273, 0
        %v298 = vsel %vm287, %v274, 0
        %v301 = vsel %vm287, %v275, 0
        %v304 = vsel %vm287, %v276, 0
        %v307 = vsel %vm287, %v277, 0
        %v310 = vsel %vm287, %v278, 0
        %v313 = vsel %vm287, %v279, 0
        %v316 = vsel %vm287, %v280, 0
        %v319 = vsel %vm287, %v281, 0
        %v322 = vsel %vm287, %v282, 0
        %v325 = vsel %vm287, %v283, 0
        %v328 = vsel %vm287, %v284, 0
        %v331 = vsel %vm287, %v285, 0
        %v334 = vsel %vm287, %v286, 0
        %vm336 = vcmask 1043456
        %v338 = vsel %vm336, %v269, 0
        %340 = vmatpush.msra.mxu0 0.0
        %341 = vmatpush.msra.mxu0 0.0
        %342 = vmatpush.msra.mxu0 0.0
        %343 = vmatpush.msra.mxu0 0.0
        %344 = vmatpush.msra.mxu0 0.0
        %345 = vmatpush.msra.mxu0 0.0
        %346 = vmatpush.msra.mxu0 0.0
        %347 = vmatpush.msra.mxu0 0.0
        %348 = vmatpush.msra.mxu0 0.0
        %349 = vmatpush.msra.mxu0 0.0
        %350 = vmatpush.msra.mxu0 0.0
        %351 = vmatpush.msra.mxu0 0.0
        %352 = vmatpush.msra.mxu0 0.0
        %353 = vmatpush.msra.mxu0 0.0
        %354 = vmatpush.msra.mxu0 0.0
        %355 = vmatpush.msra.mxu0 %v338
        %356 = vmatmul.f32.gmra.mxu0 %v289
        %v357 = vpop.f32.mrf.mxu0
        %v358 = vadd.f32 0.0, %v357
        %359 = vmatmul.f32.gmra.mxu0 %v292
        %v360 = vpop.f32.mrf.mxu0
        %v361 = vadd.f32 0.0, %v360
        %362 = vmatmul.f32.gmra.mxu0 %v295
        %v363 = vpop.f32.mrf.mxu0
        %v364 = vadd.f32 0.0, %v363
        %365 = vmatmul.f32.gmra.mxu0 %v298
        %v366 = vpop.f32.mrf.mxu0
        %v367 = vadd.f32 0.0, %v366
        %368 = vmatmul.f32.gmra.mxu0 %v301
        %v369 = vpop.f32.mrf.mxu0
        %v370 = vadd.f32 0.0, %v369
        %371 = vmatmul.f32.gmra.mxu0 %v304
        %v372 = vpop.f32.mrf.mxu0
        %v373 = vadd.f32 0.0, %v372
        %374 = vmatmul.f32.gmra.mxu0 %v307
        %v375 = vpop.f32.mrf.mxu0
        %v376 = vadd.f32 0.0, %v375
        %377 = vmatmul.f32.gmra.mxu0 %v310
        %v378 = vpop.f32.mrf.mxu0
        %v379 = vadd.f32 0.0, %v378
        %380 = vmatmul.f32.gmra.mxu0 %v313
        %v381 = vpop.f32.mrf.mxu0
        %v382 = vadd.f32 0.0, %v381
        %383 = vmatmul.f32.gmra.mxu0 %v316
        %v384 = vpop.f32.mrf.mxu0
        %v385 = vadd.f32 0.0, %v384
        %386 = vmatmul.f32.gmra.mxu0 %v319
        %v387 = vpop.f32.mrf.mxu0
        %v388 = vadd.f32 0.0, %v387
        %389 = vmatmul.f32.gmra.mxu0 %v322
        %v390 = vpop.f32.mrf.mxu0
        %v391 = vadd.f32 0.0, %v390
        %392 = vmatmul.f32.gmra.mxu0 %v325
        %v393 = vpop.f32.mrf.mxu0
        %v394 = vadd.f32 0.0, %v393
        %395 = vmatmul.f32.gmra.mxu0 %v328
        %v396 = vpop.f32.mrf.mxu0
        %v397 = vadd.f32 0.0, %v396
        %398 = vmatmul.f32.gmra.mxu0 %v331
        %v399 = vpop.f32.mrf.mxu0
        %v400 = vadd.f32 0.0, %v399
        %401 = vmatmul.f32.gmra.mxu0 %v334
        %v402 = vpop.f32.mrf.mxu0
        %v403 = vadd.f32 0.0, %v402
        %404 = vdwg.mxu0
        %v405 = vld [vmem:[%s2 + $0x80] sm:$0xff]
        %v406 = vld [vmem:[%s2 + $0x88] sm:$0xff]
        %v407 = vld [vmem:[%s2 + $0x90] sm:$0xff]
        %v408 = vld [vmem:[%s2 + $0x98] sm:$0xff]
        %v409 = vld [vmem:[%s2 + $0xa0] sm:$0xff]
        %v410 = vld [vmem:[%s2 + $0xa8] sm:$0xff]
        %v411 = vld [vmem:[%s2 + $0xb0] sm:$0xff]
        %v412 = vld [vmem:[%s2 + $0xb8] sm:$0xff]
        %v413 = vld [vmem:[%s2 + $0xc0] sm:$0xff]
        %v414 = vld [vmem:[%s2 + $0xc8] sm:$0xff]
        %v415 = vld [vmem:[%s2 + $0xd0] sm:$0xff]
        %v416 = vld [vmem:[%s2 + $0xd8] sm:$0xff]
        %v417 = vld [vmem:[%s2 + $0xe0] sm:$0xff]
        %v418 = vld [vmem:[%s2 + $0xe8] sm:$0xff]
        %v419 = vld [vmem:[%s2 + $0xf0] sm:$0xff]
        %v420 = vld [vmem:[%s2 + $0xf8] sm:$0xff]
        %v421 = vld [vmem:[%s2 + $0x100] sm:$0xff]
        %v422 = vld [vmem:[%s2 + $0x108] sm:$0xff]
        %v423 = vld [vmem:[%s2 + $0x110] sm:$0xff]
        %v424 = vld [vmem:[%s2 + $0x118] sm:$0xff]
        %v425 = vld [vmem:[%s2 + $0x120] sm:$0xff]
        %v426 = vld [vmem:[%s2 + $0x128] sm:$0xff]
        %v427 = vld [vmem:[%s2 + $0x130] sm:$0xff]
        %v428 = vld [vmem:[%s2 + $0x138] sm:$0xff]
        %v429 = vld [vmem:[%s2 + $0x140] sm:$0xff]
        %v430 = vld [vmem:[%s2 + $0x148] sm:$0xff]
        %v431 = vld [vmem:[%s2 + $0x150] sm:$0xff]
        %v432 = vld [vmem:[%s2 + $0x158] sm:$0xff]
        %v433 = vld [vmem:[%s2 + $0x160] sm:$0xff]
        %v434 = vld [vmem:[%s2 + $0x168] sm:$0xff]
        %v435 = vld [vmem:[%s2 + $0x170] sm:$0xff]
        %v436 = vld [vmem:[%s2 + $0x178] sm:$0xff]
        %438 = vst [vmem:[#allocation1] ss:$2 sm:$0xff] %v270
        %v439 = vld.sshfl [vmem:[#allocation1] sm:$0xff pattern:$0x75316420]
        %v440 = vld.sshfl [vmem:[#allocation1 + $0x8] sm:$0xff pattern:$0x75316420]
        %v442 = vsel %vm287, %v405, 0
        %v445 = vsel %vm287, %v406, 0
        %v448 = vsel %vm287, %v407, 0
        %v451 = vsel %vm287, %v408, 0
        %v454 = vsel %vm287, %v409, 0
        %v457 = vsel %vm287, %v410, 0
        %v460 = vsel %vm287, %v411, 0
        %v463 = vsel %vm287, %v412, 0
        %v466 = vsel %vm287, %v413, 0
        %v469 = vsel %vm287, %v414, 0
        %v472 = vsel %vm287, %v415, 0
        %v475 = vsel %vm287, %v416, 0
        %v478 = vsel %vm287, %v417, 0
        %v481 = vsel %vm287, %v418, 0
        %v484 = vsel %vm287, %v419, 0
        %v487 = vsel %vm287, %v420, 0
        %v490 = vsel %vm287, %v421, 0
        %v493 = vsel %vm287, %v422, 0
        %v496 = vsel %vm287, %v423, 0
        %v499 = vsel %vm287, %v424, 0
        %v502 = vsel %vm287, %v425, 0
        %v505 = vsel %vm287, %v426, 0
        %v508 = vsel %vm287, %v427, 0
        %v511 = vsel %vm287, %v428, 0
        %v514 = vsel %vm287, %v429, 0
        %v517 = vsel %vm287, %v430, 0
        %v520 = vsel %vm287, %v431, 0
        %v523 = vsel %vm287, %v432, 0
        %v526 = vsel %vm287, %v433, 0
        %v529 = vsel %vm287, %v434, 0
        %v532 = vsel %vm287, %v435, 0
        %v535 = vsel %vm287, %v436, 0
        %v537 = vsel %vm336, %v439, 0
        %v539 = vsel %vm336, %v440, 0
        %541 = vmatpush.msra.mxu0 0.0
        %542 = vmatpush.msra.mxu0 0.0
        %543 = vmatpush.msra.mxu0 0.0
        %544 = vmatpush.msra.mxu0 0.0
        %545 = vmatpush.msra.mxu0 0.0
        %546 = vmatpush.msra.mxu0 0.0
        %547 = vmatpush.msra.mxu0 0.0
        %548 = vmatpush.msra.mxu0 0.0
        %549 = vmatpush.msra.mxu0 0.0
        %550 = vmatpush.msra.mxu0 0.0
        %551 = vmatpush.msra.mxu0 0.0
        %552 = vmatpush.msra.mxu0 0.0
        %553 = vmatpush.msra.mxu0 0.0
        %554 = vmatpush.msra.mxu0 0.0
        %555 = vmatpush.msra.mxu0 0.0
        %556 = vmatpush.msra.mxu0 %v537
        %557 = vmatmul.f32.gmra.mxu0 %v442
        %v558 = vpop.f32.mrf.mxu0
        %v559 = vadd.f32 0.0, %v558
        %560 = vmatmul.f32.gmra.mxu0 %v445
        %v561 = vpop.f32.mrf.mxu0
        %v562 = vadd.f32 0.0, %v561
        %563 = vmatmul.f32.gmra.mxu0 %v448
        %v564 = vpop.f32.mrf.mxu0
        %v565 = vadd.f32 0.0, %v564
        %566 = vmatmul.f32.gmra.mxu0 %v451
        %v567 = vpop.f32.mrf.mxu0
        %v568 = vadd.f32 0.0, %v567
        %569 = vmatmul.f32.gmra.mxu0 %v454
        %v570 = vpop.f32.mrf.mxu0
        %v571 = vadd.f32 0.0, %v570
        %572 = vmatmul.f32.gmra.mxu0 %v457
        %v573 = vpop.f32.mrf.mxu0
        %v574 = vadd.f32 0.0, %v573
        %575 = vmatmul.f32.gmra.mxu0 %v460
        %v576 = vpop.f32.mrf.mxu0
        %v577 = vadd.f32 0.0, %v576
        %578 = vmatmul.f32.gmra.mxu0 %v463
        %v579 = vpop.f32.mrf.mxu0
        %v580 = vadd.f32 0.0, %v579
        %581 = vmatmul.f32.gmra.mxu0 %v466
        %v582 = vpop.f32.mrf.mxu0
        %v583 = vadd.f32 0.0, %v582
        %584 = vmatmul.f32.gmra.mxu0 %v469
        %v585 = vpop.f32.mrf.mxu0
        %v586 = vadd.f32 0.0, %v585
        %587 = vmatmul.f32.gmra.mxu0 %v472
        %v588 = vpop.f32.mrf.mxu0
        %v589 = vadd.f32 0.0, %v588
        %590 = vmatmul.f32.gmra.mxu0 %v475
        %v591 = vpop.f32.mrf.mxu0
        %v592 = vadd.f32 0.0, %v591
        %593 = vmatmul.f32.gmra.mxu0 %v478
        %v594 = vpop.f32.mrf.mxu0
        %v595 = vadd.f32 0.0, %v594
        %596 = vmatmul.f32.gmra.mxu0 %v481
        %v597 = vpop.f32.mrf.mxu0
        %v598 = vadd.f32 0.0, %v597
        %599 = vmatmul.f32.gmra.mxu0 %v484
        %v600 = vpop.f32.mrf.mxu0
        %v601 = vadd.f32 0.0, %v600
        %602 = vmatmul.f32.gmra.mxu0 %v487
        %v603 = vpop.f32.mrf.mxu0
        %v604 = vadd.f32 0.0, %v603
        %605 = vmatmul.f32.gmra.mxu0 %v490
        %v606 = vpop.f32.mrf.mxu0
        %v607 = vadd.f32 0.0, %v606
        %608 = vmatmul.f32.gmra.mxu0 %v493
        %v609 = vpop.f32.mrf.mxu0
        %v610 = vadd.f32 0.0, %v609
        %611 = vmatmul.f32.gmra.mxu0 %v496
        %v612 = vpop.f32.mrf.mxu0
        %v613 = vadd.f32 0.0, %v612
        %614 = vmatmul.f32.gmra.mxu0 %v499
        %v615 = vpop.f32.mrf.mxu0
        %v616 = vadd.f32 0.0, %v615
        %617 = vmatmul.f32.gmra.mxu0 %v502
        %v618 = vpop.f32.mrf.mxu0
        %v619 = vadd.f32 0.0, %v618
        %620 = vmatmul.f32.gmra.mxu0 %v505
        %v621 = vpop.f32.mrf.mxu0
        %v622 = vadd.f32 0.0, %v621
        %623 = vmatmul.f32.gmra.mxu0 %v508
        %v624 = vpop.f32.mrf.mxu0
        %v625 = vadd.f32 0.0, %v624
        %626 = vmatmul.f32.gmra.mxu0 %v511
        %v627 = vpop.f32.mrf.mxu0
        %v628 = vadd.f32 0.0, %v627
        %629 = vmatmul.f32.gmra.mxu0 %v514
        %v630 = vpop.f32.mrf.mxu0
        %v631 = vadd.f32 0.0, %v630
        %632 = vmatmul.f32.gmra.mxu0 %v517
        %v633 = vpop.f32.mrf.mxu0
        %v634 = vadd.f32 0.0, %v633
        %635 = vmatmul.f32.gmra.mxu0 %v520
        %v636 = vpop.f32.mrf.mxu0
        %v637 = vadd.f32 0.0, %v636
        %638 = vmatmul.f32.gmra.mxu0 %v523
        %v639 = vpop.f32.mrf.mxu0
        %v640 = vadd.f32 0.0, %v639
        %641 = vmatmul.f32.gmra.mxu0 %v526
        %v642 = vpop.f32.mrf.mxu0
        %v643 = vadd.f32 0.0, %v642
        %644 = vmatmul.f32.gmra.mxu0 %v529
        %v645 = vpop.f32.mrf.mxu0
        %v646 = vadd.f32 0.0, %v645
        %647 = vmatmul.f32.gmra.mxu0 %v532
        %v648 = vpop.f32.mrf.mxu0
        %v649 = vadd.f32 0.0, %v648
        %650 = vmatmul.f32.gmra.mxu0 %v535
        %v651 = vpop.f32.mrf.mxu0
        %v652 = vadd.f32 0.0, %v651
        %653 = vdwg.mxu0
        %654 = vmatpush.msra.mxu0 0.0
        %655 = vmatpush.msra.mxu0 0.0
        %656 = vmatpush.msra.mxu0 0.0
        %657 = vmatpush.msra.mxu0 0.0
        %658 = vmatpush.msra.mxu0 0.0
        %659 = vmatpush.msra.mxu0 0.0
        %660 = vmatpush.msra.mxu0 0.0
        %661 = vmatpush.msra.mxu0 0.0
        %662 = vmatpush.msra.mxu0 0.0
        %663 = vmatpush.msra.mxu0 0.0
        %664 = vmatpush.msra.mxu0 0.0
        %665 = vmatpush.msra.mxu0 0.0
        %666 = vmatpush.msra.mxu0 0.0
        %667 = vmatpush.msra.mxu0 0.0
        %668 = vmatpush.msra.mxu0 0.0
        %669 = vmatpush.msra.mxu0 %v539
        %670 = vmatmul.f32.gmra.mxu0 %v442
        %v671 = vpop.f32.mrf.mxu0
        %v672 = vadd.f32 0.0, %v671
        %673 = vmatmul.f32.gmra.mxu0 %v445
        %v674 = vpop.f32.mrf.mxu0
        %v675 = vadd.f32 0.0, %v674
        %676 = vmatmul.f32.gmra.mxu0 %v448
        %v677 = vpop.f32.mrf.mxu0
        %v678 = vadd.f32 0.0, %v677
        %679 = vmatmul.f32.gmra.mxu0 %v451
        %v680 = vpop.f32.mrf.mxu0
        %v681 = vadd.f32 0.0, %v680
        %682 = vmatmul.f32.gmra.mxu0 %v454
        %v683 = vpop.f32.mrf.mxu0
        %v684 = vadd.f32 0.0, %v683
        %685 = vmatmul.f32.gmra.mxu0 %v457
        %v686 = vpop.f32.mrf.mxu0
        %v687 = vadd.f32 0.0, %v686
        %688 = vmatmul.f32.gmra.mxu0 %v460
        %v689 = vpop.f32.mrf.mxu0
        %v690 = vadd.f32 0.0, %v689
        %691 = vmatmul.f32.gmra.mxu0 %v463
        %v692 = vpop.f32.mrf.mxu0
        %v693 = vadd.f32 0.0, %v692
        %694 = vmatmul.f32.gmra.mxu0 %v466
        %v695 = vpop.f32.mrf.mxu0
        %v696 = vadd.f32 0.0, %v695
        %697 = vmatmul.f32.gmra.mxu0 %v469
        %v698 = vpop.f32.mrf.mxu0
        %v699 = vadd.f32 0.0, %v698
        %700 = vmatmul.f32.gmra.mxu0 %v472
        %v701 = vpop.f32.mrf.mxu0
        %v702 = vadd.f32 0.0, %v701
        %703 = vmatmul.f32.gmra.mxu0 %v475
        %v704 = vpop.f32.mrf.mxu0
        %v705 = vadd.f32 0.0, %v704
        %706 = vmatmul.f32.gmra.mxu0 %v478
        %v707 = vpop.f32.mrf.mxu0
        %v708 = vadd.f32 0.0, %v707
        %709 = vmatmul.f32.gmra.mxu0 %v481
        %v710 = vpop.f32.mrf.mxu0
        %v711 = vadd.f32 0.0, %v710
        %712 = vmatmul.f32.gmra.mxu0 %v484
        %v713 = vpop.f32.mrf.mxu0
        %v714 = vadd.f32 0.0, %v713
        %715 = vmatmul.f32.gmra.mxu0 %v487
        %v716 = vpop.f32.mrf.mxu0
        %v717 = vadd.f32 0.0, %v716
        %718 = vmatmul.f32.gmra.mxu0 %v490
        %v719 = vpop.f32.mrf.mxu0
        %v720 = vadd.f32 0.0, %v719
        %721 = vmatmul.f32.gmra.mxu0 %v493
        %v722 = vpop.f32.mrf.mxu0
        %v723 = vadd.f32 0.0, %v722
        %724 = vmatmul.f32.gmra.mxu0 %v496
        %v725 = vpop.f32.mrf.mxu0
        %v726 = vadd.f32 0.0, %v725
        %727 = vmatmul.f32.gmra.mxu0 %v499
        %v728 = vpop.f32.mrf.mxu0
        %v729 = vadd.f32 0.0, %v728
        %730 = vmatmul.f32.gmra.mxu0 %v502
        %v731 = vpop.f32.mrf.mxu0
        %v732 = vadd.f32 0.0, %v731
        %733 = vmatmul.f32.gmra.mxu0 %v505
        %v734 = vpop.f32.mrf.mxu0
        %v735 = vadd.f32 0.0, %v734
        %736 = vmatmul.f32.gmra.mxu0 %v508
        %v737 = vpop.f32.mrf.mxu0
        %v738 = vadd.f32 0.0, %v737
        %739 = vmatmul.f32.gmra.mxu0 %v511
        %v740 = vpop.f32.mrf.mxu0
        %v741 = vadd.f32 0.0, %v740
        %742 = vmatmul.f32.gmra.mxu0 %v514
        %v743 = vpop.f32.mrf.mxu0
        %v744 = vadd.f32 0.0, %v743
        %745 = vmatmul.f32.gmra.mxu0 %v517
        %v746 = vpop.f32.mrf.mxu0
        %v747 = vadd.f32 0.0, %v746
        %748 = vmatmul.f32.gmra.mxu0 %v520
        %v749 = vpop.f32.mrf.mxu0
        %v750 = vadd.f32 0.0, %v749
        %751 = vmatmul.f32.gmra.mxu0 %v523
        %v752 = vpop.f32.mrf.mxu0
        %v753 = vadd.f32 0.0, %v752
        %754 = vmatmul.f32.gmra.mxu0 %v526
        %v755 = vpop.f32.mrf.mxu0
        %v756 = vadd.f32 0.0, %v755
        %757 = vmatmul.f32.gmra.mxu0 %v529
        %v758 = vpop.f32.mrf.mxu0
        %v759 = vadd.f32 0.0, %v758
        %760 = vmatmul.f32.gmra.mxu0 %v532
        %v761 = vpop.f32.mrf.mxu0
        %v762 = vadd.f32 0.0, %v761
        %763 = vmatmul.f32.gmra.mxu0 %v535
        %v764 = vpop.f32.mrf.mxu0
        %v765 = vadd.f32 0.0, %v764
        %766 = vdwg.mxu0
        %767 = vxpose.xlu0.b32.start [1/16] %v559, 128
        %768 = vxpose.xlu0.b32.cont [2/16] %v562, 128
        %769 = vxpose.xlu0.b32.cont [3/16] %v565, 128
        %770 = vxpose.xlu0.b32.cont [4/16] %v568, 128
        %771 = vxpose.xlu0.b32.cont [5/16] 0.0, 128
        %772 = vxpose.xlu0.b32.cont [6/16] 0.0, 128
        %773 = vxpose.xlu0.b32.cont [7/16] 0.0, 128
        %774 = vxpose.xlu0.b32.cont [8/16] 0.0, 128
        %775 = vxpose.xlu0.b32.cont [9/16] 0.0, 128
        %776 = vxpose.xlu0.b32.cont [10/16] 0.0, 128
        %777 = vxpose.xlu0.b32.cont [11/16] 0.0, 128
        %778 = vxpose.xlu0.b32.cont [12/16] 0.0, 128
        %779 = vxpose.xlu0.b32.cont [13/16] 0.0, 128
        %780 = vxpose.xlu0.b32.cont [14/16] 0.0, 128
        %781 = vxpose.xlu0.b32.cont [15/16] 0.0, 128
        %782 = vxpose.xlu0.b32.end [16/16] 0.0, 128
        %v783 = vpop.trf.xlu0
        %v784 = vpop.trf.xlu0
        %v785 = vpop.trf.xlu0
        %v786 = vpop.trf.xlu0
        %v787 = vpop.trf.xlu0
        %v788 = vpop.trf.xlu0
        %v789 = vpop.trf.xlu0
        %v790 = vpop.trf.xlu0
        %v791 = vpop.trf.xlu0
        %v792 = vpop.trf.xlu0
        %v793 = vpop.trf.xlu0
        %v794 = vpop.trf.xlu0
        %v795 = vpop.trf.xlu0
        %v796 = vpop.trf.xlu0
        %v797 = vpop.trf.xlu0
        %v798 = vpop.trf.xlu0
        %799 = vxpose.xlu0.b32.start [1/16] %v672, 128
        %800 = vxpose.xlu0.b32.cont [2/16] %v675, 128
        %801 = vxpose.xlu0.b32.cont [3/16] %v678, 128
        %802 = vxpose.xlu0.b32.cont [4/16] %v681, 128
        %803 = vxpose.xlu0.b32.cont [5/16] 0.0, 128
        %804 = vxpose.xlu0.b32.cont [6/16] 0.0, 128
        %805 = vxpose.xlu0.b32.cont [7/16] 0.0, 128
        %806 = vxpose.xlu0.b32.cont [8/16] 0.0, 128
        %807 = vxpose.xlu0.b32.cont [9/16] 0.0, 128
        %808 = vxpose.xlu0.b32.cont [10/16] 0.0, 128
        %809 = vxpose.xlu0.b32.cont [11/16] 0.0, 128
        %810 = vxpose.xlu0.b32.cont [12/16] 0.0, 128
        %811 = vxpose.xlu0.b32.cont [13/16] 0.0, 128
        %812 = vxpose.xlu0.b32.cont [14/16] 0.0, 128
        %813 = vxpose.xlu0.b32.cont [15/16] 0.0, 128
        %814 = vxpose.xlu0.b32.end [16/16] 0.0, 128
        %v815 = vpop.trf.xlu0
        %v816 = vpop.trf.xlu0
        %v817 = vpop.trf.xlu0
        %v818 = vpop.trf.xlu0
        %v819 = vpop.trf.xlu0
        %v820 = vpop.trf.xlu0
        %v821 = vpop.trf.xlu0
        %v822 = vpop.trf.xlu0
        %v823 = vpop.trf.xlu0
        %v824 = vpop.trf.xlu0
        %v825 = vpop.trf.xlu0
        %v826 = vpop.trf.xlu0
        %v827 = vpop.trf.xlu0
        %v828 = vpop.trf.xlu0
        %v829 = vpop.trf.xlu0
        %v830 = vpop.trf.xlu0
        %v831 = vpack.c.bf16 %v784, %v783
        %v832 = vpack.c.bf16 %v786, %v785
        %v833 = vpack.c.bf16 %v788, %v787
        %v834 = vpack.c.bf16 %v790, %v789
        %v835 = vpack.c.bf16 %v792, %v791
        %v836 = vpack.c.bf16 %v794, %v793
        %v837 = vpack.c.bf16 %v796, %v795
        %v838 = vpack.c.bf16 %v798, %v797
        %v839 = vpack.c.bf16 %v816, %v815
        %v840 = vpack.c.bf16 %v818, %v817
        %v841 = vpack.c.bf16 %v820, %v819
        %v842 = vpack.c.bf16 %v822, %v821
        %v843 = vpack.c.bf16 %v824, %v823
        %v844 = vpack.c.bf16 %v826, %v825
        %v845 = vpack.c.bf16 %v828, %v827
        %v846 = vpack.c.bf16 %v830, %v829
        %v847 = vpack.c.bf16 %v361, %v358
        %v848 = vpack.c.bf16 %v367, %v364
        %vm849 = vcmask 261120
        %v851 = vsel %vm849, %v831, 0
        %v854 = vsel %vm849, %v832, 0
        %v857 = vsel %vm849, %v833, 0
        %v860 = vsel %vm849, %v834, 0
        %v863 = vsel %vm849, %v835, 0
        %v866 = vsel %vm849, %v836, 0
        %v869 = vsel %vm849, %v837, 0
        %v872 = vsel %vm849, %v838, 0
        %v875 = vsel %vm849, %v839, 0
        %v878 = vsel %vm849, %v840, 0
        %v881 = vsel %vm849, %v841, 0
        %v884 = vsel %vm849, %v842, 0
        %v887 = vsel %vm849, %v843, 0
        %v890 = vsel %vm849, %v844, 0
        %v893 = vsel %vm849, %v845, 0
        %v896 = vsel %vm849, %v846, 0
        %898 = vmatpush.bf16.msra.mxu0 0
        %899 = vmatpush.bf16.msra.mxu0 0
        %900 = vmatpush.bf16.msra.mxu0 0
        %901 = vmatpush.bf16.msra.mxu0 0
        %902 = vmatpush.bf16.msra.mxu0 0
        %903 = vmatpush.bf16.msra.mxu0 0
        %904 = vmatpush.bf16.msra.mxu0 %v848
        %905 = vmatpush.bf16.msra.mxu0 %v847
        %906 = vmatmul.bf16.gmra.mxu0 %v851
        %v907 = vpop.f32.mrf.mxu0
        %v908 = vadd.f32 0.0, %v907
        %v909 = vpop.f32.mrf.mxu0
        %v910 = vadd.f32 0.0, %v909
        %911 = vmatmul.bf16.gmra.mxu0 %v854
        %v912 = vpop.f32.mrf.mxu0
        %v913 = vadd.f32 0.0, %v912
        %v914 = vpop.f32.mrf.mxu0
        %v915 = vadd.f32 0.0, %v914
        %916 = vmatmul.bf16.gmra.mxu0 %v857
        %v917 = vpop.f32.mrf.mxu0
        %v918 = vadd.f32 0.0, %v917
        %v919 = vpop.f32.mrf.mxu0
        %v920 = vadd.f32 0.0, %v919
        %921 = vmatmul.bf16.gmra.mxu0 %v860
        %v922 = vpop.f32.mrf.mxu0
        %v923 = vadd.f32 0.0, %v922
        %v924 = vpop.f32.mrf.mxu0
        %v925 = vadd.f32 0.0, %v924
        %926 = vmatmul.bf16.gmra.mxu0 %v863
        %v927 = vpop.f32.mrf.mxu0
        %v928 = vadd.f32 0.0, %v927
        %v929 = vpop.f32.mrf.mxu0
        %v930 = vadd.f32 0.0, %v929
        %931 = vmatmul.bf16.gmra.mxu0 %v866
        %v932 = vpop.f32.mrf.mxu0
        %v933 = vadd.f32 0.0, %v932
        %v934 = vpop.f32.mrf.mxu0
        %v935 = vadd.f32 0.0, %v934
        %936 = vmatmul.bf16.gmra.mxu0 %v869
        %v937 = vpop.f32.mrf.mxu0
        %v938 = vadd.f32 0.0, %v937
        %v939 = vpop.f32.mrf.mxu0
        %v940 = vadd.f32 0.0, %v939
        %941 = vmatmul.bf16.gmra.mxu0 %v872
        %v942 = vpop.f32.mrf.mxu0
        %v943 = vadd.f32 0.0, %v942
        %v944 = vpop.f32.mrf.mxu0
        %v945 = vadd.f32 0.0, %v944
        %946 = vmatmul.bf16.gmra.mxu0 %v875
        %v947 = vpop.f32.mrf.mxu0
        %v948 = vadd.f32 0.0, %v947
        %v949 = vpop.f32.mrf.mxu0
        %v950 = vadd.f32 0.0, %v949
        %951 = vmatmul.bf16.gmra.mxu0 %v878
        %v952 = vpop.f32.mrf.mxu0
        %v953 = vadd.f32 0.0, %v952
        %v954 = vpop.f32.mrf.mxu0
        %v955 = vadd.f32 0.0, %v954
        %956 = vmatmul.bf16.gmra.mxu0 %v881
        %v957 = vpop.f32.mrf.mxu0
        %v958 = vadd.f32 0.0, %v957
        %v959 = vpop.f32.mrf.mxu0
        %v960 = vadd.f32 0.0, %v959
        %961 = vmatmul.bf16.gmra.mxu0 %v884
        %v962 = vpop.f32.mrf.mxu0
        %v963 = vadd.f32 0.0, %v962
        %v964 = vpop.f32.mrf.mxu0
        %v965 = vadd.f32 0.0, %v964
        %966 = vmatmul.bf16.gmra.mxu0 %v887
        %v967 = vpop.f32.mrf.mxu0
        %v968 = vadd.f32 0.0, %v967
        %v969 = vpop.f32.mrf.mxu0
        %v970 = vadd.f32 0.0, %v969
        %971 = vmatmul.bf16.gmra.mxu0 %v890
        %v972 = vpop.f32.mrf.mxu0
        %v973 = vadd.f32 0.0, %v972
        %v974 = vpop.f32.mrf.mxu0
        %v975 = vadd.f32 0.0, %v974
        %976 = vmatmul.bf16.gmra.mxu0 %v893
        %v977 = vpop.f32.mrf.mxu0
        %v978 = vadd.f32 0.0, %v977
        %v979 = vpop.f32.mrf.mxu0
        %v980 = vadd.f32 0.0, %v979
        %981 = vmatmul.bf16.gmra.mxu0 %v896
        %v982 = vpop.f32.mrf.mxu0
        %v983 = vadd.f32 0.0, %v982
        %v984 = vpop.f32.mrf.mxu0
        %v985 = vadd.f32 0.0, %v984
        %986 = vdwg.mxu0
        %v987 = vmax.f32 %v908, %v918
        %v988 = vmax.f32 %v910, %v920
        %v989 = vmax.f32 %v913, %v923
        %v990 = vmax.f32 %v915, %v925
        %v991 = vmax.f32 %v987, %v928
        %v992 = vmax.f32 %v988, %v930
        %v993 = vmax.f32 %v989, %v933
        %v994 = vmax.f32 %v990, %v935
        %v995 = vmax.f32 %v991, %v938
        %v996 = vmax.f32 %v992, %v940
        %v997 = vmax.f32 %v993, %v943
        %v998 = vmax.f32 %v994, %v945
        %v999 = vmax.f32 %v995, %v948
        %v1000 = vmax.f32 %v996, %v950
        %v1001 = vmax.f32 %v997, %v953
        %v1002 = vmax.f32 %v998, %v955
        %v1003 = vmax.f32 %v999, %v958
        %v1004 = vmax.f32 %v1000, %v960
        %v1005 = vmax.f32 %v1001, %v963
        %v1006 = vmax.f32 %v1002, %v965
        %v1007 = vmax.f32 %v1003, %v968
        %v1008 = vmax.f32 %v1004, %v970
        %v1009 = vmax.f32 %v1005, %v973
        %v1010 = vmax.f32 %v1006, %v975
        %v1011 = vmax.f32 %v1007, %v978
        %v1012 = vmax.f32 %v1008, %v980
        %v1013 = vmax.f32 %v1009, %v983
        %v1014 = vmax.f32 %v1010, %v985
        %v1015 = vmax.f32 %v1011, %v1012
        %v1016 = vmax.f32 %v1013, %v1014
        %v1017 = vmax.f32 %v1015, %v1016
        %v1018 = vrot.slane %v1017, 4
        %v1019 = vmax.f32 %v1017, %v1018
        %v1020 = vrot.slane %v1019, 2
        %v1021 = vmax.f32 %v1019, %v1020
        %v1022 = vrot.slane %v1021, 1
        %v1023 = vmax.f32 %v1021, %v1022
        %v1024 = vsub.f32 %v908, %v1023
        %v1025 = vsub.f32 %v910, %v1023
        %v1026 = vsub.f32 %v913, %v1023
        %v1027 = vsub.f32 %v915, %v1023
        %v1028 = vsub.f32 %v918, %v1023
        %v1029 = vsub.f32 %v920, %v1023
        %v1030 = vsub.f32 %v923, %v1023
        %v1031 = vsub.f32 %v925, %v1023
        %v1032 = vsub.f32 %v928, %v1023
        %v1033 = vsub.f32 %v930, %v1023
        %v1034 = vsub.f32 %v933, %v1023
        %v1035 = vsub.f32 %v935, %v1023
        %v1036 = vsub.f32 %v938, %v1023
        %v1037 = vsub.f32 %v940, %v1023
        %v1038 = vsub.f32 %v943, %v1023
        %v1039 = vsub.f32 %v945, %v1023
        %v1040 = vsub.f32 %v948, %v1023
        %v1041 = vsub.f32 %v950, %v1023
        %v1042 = vsub.f32 %v953, %v1023
        %v1043 = vsub.f32 %v955, %v1023
        %v1044 = vsub.f32 %v958, %v1023
        %v1045 = vsub.f32 %v960, %v1023
        %v1046 = vsub.f32 %v963, %v1023
        %v1047 = vsub.f32 %v965, %v1023
        %v1048 = vsub.f32 %v968, %v1023
        %v1049 = vsub.f32 %v970, %v1023
        %v1050 = vsub.f32 %v973, %v1023
        %v1051 = vsub.f32 %v975, %v1023
        %v1052 = vsub.f32 %v978, %v1023
        %v1053 = vsub.f32 %v980, %v1023
        %v1054 = vsub.f32 %v983, %v1023
        %v1055 = vsub.f32 %v985, %v1023
        %v1056 = vmul.f32 %v1024, 1.442695
        %v1057 = vpow.pop %v1056
        %v1058 = vmul.f32 %v1025, 1.442695
        %v1059 = vpow.pop %v1058
        %v1060 = vmul.f32 %v1026, 1.442695
        %v1061 = vpow.pop %v1060
        %v1062 = vmul.f32 %v1027, 1.442695
        %v1063 = vpow.pop %v1062
        %v1064 = vmul.f32 %v1028, 1.442695
        %v1065 = vpow.pop %v1064
        %v1066 = vmul.f32 %v1029, 1.442695
        %v1067 = vpow.pop %v1066
        %v1068 = vmul.f32 %v1030, 1.442695
        %v1069 = vpow.pop %v1068
        %v1070 = vmul.f32 %v1031, 1.442695
        %v1071 = vpow.pop %v1070
        %v1072 = vmul.f32 %v1032, 1.442695
        %v1073 = vpow.pop %v1072
        %v1074 = vmul.f32 %v1033, 1.442695
        %v1075 = vpow.pop %v1074
        %v1076 = vmul.f32 %v1034, 1.442695
        %v1077 = vpow.pop %v1076
        %v1078 = vmul.f32 %v1035, 1.442695
        %v1079 = vpow.pop %v1078
        %v1080 = vmul.f32 %v1036, 1.442695
        %v1081 = vpow.pop %v1080
        %v1082 = vmul.f32 %v1037, 1.442695
        %v1083 = vpow.pop %v1082
        %v1084 = vmul.f32 %v1038, 1.442695
        %v1085 = vpow.pop %v1084
        %v1086 = vmul.f32 %v1039, 1.442695
        %v1087 = vpow.pop %v1086
        %v1088 = vmul.f32 %v1040, 1.442695
        %v1089 = vpow.pop %v1088
        %v1090 = vmul.f32 %v1041, 1.442695
        %v1091 = vpow.pop %v1090
        %v1092 = vmul.f32 %v1042, 1.442695
        %v1093 = vpow.pop %v1092
        %v1094 = vmul.f32 %v1043, 1.442695
        %v1095 = vpow.pop %v1094
        %v1096 = vmul.f32 %v1044, 1.442695
        %v1097 = vpow.pop %v1096
        %v1098 = vmul.f32 %v1045, 1.442695
        %v1099 = vpow.pop %v1098
        %v1100 = vmul.f32 %v1046, 1.442695
        %v1101 = vpow.pop %v1100
        %v1102 = vmul.f32 %v1047, 1.442695
        %v1103 = vpow.pop %v1102
        %v1104 = vmul.f32 %v1048, 1.442695
        %v1105 = vpow.pop %v1104
        %v1106 = vmul.f32 %v1049, 1.442695
        %v1107 = vpow.pop %v1106
        %v1108 = vmul.f32 %v1050, 1.442695
        %v1109 = vpow.pop %v1108
        %v1110 = vmul.f32 %v1051, 1.442695
        %v1111 = vpow.pop %v1110
        %v1112 = vmul.f32 %v1052, 1.442695
        %v1113 = vpow.pop %v1112
        %v1114 = vmul.f32 %v1053, 1.442695
        %v1115 = vpow.pop %v1114
        %v1116 = vmul.f32 %v1054, 1.442695
        %v1117 = vpow.pop %v1116
        %v1118 = vmul.f32 %v1055, 1.442695
        %v1119 = vpow.pop %v1118
        %v1120 = vadd.f32 %v1057, %v1059
        %v1121 = vadd.f32 %v1120, %v1061
        %v1122 = vadd.f32 %v1121, %v1063
        %v1123 = vadd.f32 %v1122, %v1065
        %v1124 = vadd.f32 %v1123, %v1067
        %v1125 = vadd.f32 %v1124, %v1069
        %v1126 = vadd.f32 %v1125, %v1071
        %v1127 = vadd.f32 %v1126, %v1073
        %v1128 = vadd.f32 %v1127, %v1075
        %v1129 = vadd.f32 %v1128, %v1077
        %v1130 = vadd.f32 %v1129, %v1079
        %v1131 = vadd.f32 %v1130, %v1081
        %v1132 = vadd.f32 %v1131, %v1083
        %v1133 = vadd.f32 %v1132, %v1085
        %v1134 = vadd.f32 %v1133, %v1087
        %v1135 = vadd.f32 %v1134, %v1089
        %v1136 = vadd.f32 %v1135, %v1091
        %v1137 = vadd.f32 %v1136, %v1093
        %v1138 = vadd.f32 %v1137, %v1095
        %v1139 = vadd.f32 %v1138, %v1097
        %v1140 = vadd.f32 %v1139, %v1099
        %v1141 = vadd.f32 %v1140, %v1101
        %v1142 = vadd.f32 %v1141, %v1103
        %v1143 = vadd.f32 %v1142, %v1105
        %v1144 = vadd.f32 %v1143, %v1107
        %v1145 = vadd.f32 %v1144, %v1109
        %v1146 = vadd.f32 %v1145, %v1111
        %v1147 = vadd.f32 %v1146, %v1113
        %v1148 = vadd.f32 %v1147, %v1115
        %v1149 = vadd.f32 %v1148, %v1117
        %v1150 = vadd.f32 %v1149, %v1119
        %v1151 = vrot.slane %v1150, 4
        %v1152 = vadd.f32 %v1150, %v1151
        %v1153 = vrot.slane %v1152, 2
        %v1154 = vadd.f32 %v1152, %v1153
        %v1155 = vrot.slane %v1154, 1
        %v1156 = vadd.f32 %v1154, %v1155
        %v1157 = vpack.c.bf16 %v610, %v607
        %v1158 = vpack.c.bf16 %v723, %v720
        %v1159 = vpack.c.bf16 %v616, %v613
        %v1160 = vpack.c.bf16 %v729, %v726
        %v1161 = vpack.c.bf16 %v1059, %v1057
        %v1162 = vpack.c.bf16 %v1063, %v1061
        %v1163 = vpack.c.bf16 %v1067, %v1065
        %v1164 = vpack.c.bf16 %v1071, %v1069
        %v1165 = vpack.c.bf16 %v1075, %v1073
        %v1166 = vpack.c.bf16 %v1079, %v1077
        %v1167 = vpack.c.bf16 %v1083, %v1081
        %v1168 = vpack.c.bf16 %v1087, %v1085
        %v1169 = vpack.c.bf16 %v1091, %v1089
        %v1170 = vpack.c.bf16 %v1095, %v1093
        %v1171 = vpack.c.bf16 %v1099, %v1097
        %v1172 = vpack.c.bf16 %v1103, %v1101
        %v1173 = vpack.c.bf16 %v1107, %v1105
        %v1174 = vpack.c.bf16 %v1111, %v1109
        %v1175 = vpack.c.bf16 %v1115, %v1113
        %v1176 = vpack.c.bf16 %v1119, %v1117
        %1177 = vmatpush.bf16.msra.mxu0 %v1168
        %1178 = vmatpush.bf16.msra.mxu0 %v1167
        %1179 = vmatpush.bf16.msra.mxu0 %v1166
        %1180 = vmatpush.bf16.msra.mxu0 %v1165
        %1181 = vmatpush.bf16.msra.mxu0 %v1164
        %1182 = vmatpush.bf16.msra.mxu0 %v1163
        %1183 = vmatpush.bf16.msra.mxu0 %v1162
        %1184 = vmatpush.bf16.msra.mxu0 %v1161
        %1185 = vmatmul.bf16.gmra.mxu0 %v1157
        %v1186 = vpop.f32.mrf.mxu0
        %v1187 = vadd.f32 0.0, %v1186
        %v1188 = vpop.f32.mrf.mxu0
        %v1189 = vadd.f32 0.0, %v1188
        %1190 = vmatmul.bf16.gmra.mxu0 %v1159
        %v1191 = vpop.f32.mrf.mxu0
        %v1192 = vadd.f32 0.0, %v1191
        %v1193 = vpop.f32.mrf.mxu0
        %v1194 = vadd.f32 0.0, %v1193
        %1195 = vdwg.mxu0
        %1196 = vmatpush.bf16.msra.mxu0 %v1176
        %1197 = vmatpush.bf16.msra.mxu0 %v1175
        %1198 = vmatpush.bf16.msra.mxu0 %v1174
        %1199 = vmatpush.bf16.msra.mxu0 %v1173
        %1200 = vmatpush.bf16.msra.mxu0 %v1172
        %1201 = vmatpush.bf16.msra.mxu0 %v1171
        %1202 = vmatpush.bf16.msra.mxu0 %v1170
        %1203 = vmatpush.bf16.msra.mxu0 %v1169
        %1204 = vmatmul.bf16.gmra.mxu0 %v1158
        %v1205 = vpop.f32.mrf.mxu0
        %v1206 = vadd.f32 %v1187, %v1205
        %v1207 = vpop.f32.mrf.mxu0
        %v1208 = vadd.f32 %v1189, %v1207
        %1209 = vmatmul.bf16.gmra.mxu0 %v1160
        %v1210 = vpop.f32.mrf.mxu0
        %v1211 = vadd.f32 %v1192, %v1210
        %v1212 = vpop.f32.mrf.mxu0
        %v1213 = vadd.f32 %v1194, %v1212
        %1214 = vdwg.mxu0
        %v1215 = vrcp.pop %v1156
        %v1216 = vmul.f32 %v1206, %v1215
        %v1217 = vmul.f32 %v1208, %v1215
        %v1218 = vmul.f32 %v1211, %v1215
        %v1219 = vmul.f32 %v1213, %v1215
        %1220 = vxpose.xlu0.b32.start [1/16] %v571, 128
        %1221 = vxpose.xlu0.b32.cont [2/16] %v574, 128
        %1222 = vxpose.xlu0.b32.cont [3/16] %v577, 128
        %1223 = vxpose.xlu0.b32.cont [4/16] %v580, 128
        %1224 = vxpose.xlu0.b32.cont [5/16] 0.0, 128
        %1225 = vxpose.xlu0.b32.cont [6/16] 0.0, 128
        %1226 = vxpose.xlu0.b32.cont [7/16] 0.0, 128
        %1227 = vxpose.xlu0.b32.cont [8/16] 0.0, 128
        %1228 = vxpose.xlu0.b32.cont [9/16] 0.0, 128
        %1229 = vxpose.xlu0.b32.cont [10/16] 0.0, 128
        %1230 = vxpose.xlu0.b32.cont [11/16] 0.0, 128
        %1231 = vxpose.xlu0.b32.cont [12/16] 0.0, 128
        %1232 = vxpose.xlu0.b32.cont [13/16] 0.0, 128
        %1233 = vxpose.xlu0.b32.cont [14/16] 0.0, 128
        %1234 = vxpose.xlu0.b32.cont [15/16] 0.0, 128
        %1235 = vxpose.xlu0.b32.end [16/16] 0.0, 128
        %v1236 = vpop.trf.xlu0
        %v1237 = vpop.trf.xlu0
        %v1238 = vpop.trf.xlu0
        %v1239 = vpop.trf.xlu0
        %v1240 = vpop.trf.xlu0
        %v1241 = vpop.trf.xlu0
        %v1242 = vpop.trf.xlu0
        %v1243 = vpop.trf.xlu0
        %v1244 = vpop.trf.xlu0
        %v1245 = vpop.trf.xlu0
        %v1246 = vpop.trf.xlu0
        %v1247 = vpop.trf.xlu0
        %v1248 = vpop.trf.xlu0
        %v1249 = vpop.trf.xlu0
        %v1250 = vpop.trf.xlu0
        %v1251 = vpop.trf.xlu0
        %1252 = vxpose.xlu0.b32.start [1/16] %v684, 128
        %1253 = vxpose.xlu0.b32.cont [2/16] %v687, 128
        %1254 = vxpose.xlu0.b32.cont [3/16] %v690, 128
        %1255 = vxpose.xlu0.b32.cont [4/16] %v693, 128
        %1256 = vxpose.xlu0.b32.cont [5/16] 0.0, 128
        %1257 = vxpose.xlu0.b32.cont [6/16] 0.0, 128
        %1258 = vxpose.xlu0.b32.cont [7/16] 0.0, 128
        %1259 = vxpose.xlu0.b32.cont [8/16] 0.0, 128
        %1260 = vxpose.xlu0.b32.cont [9/16] 0.0, 128
        %1261 = vxpose.xlu0.b32.cont [10/16] 0.0, 128
        %1262 = vxpose.xlu0.b32.cont [11/16] 0.0, 128
        %1263 = vxpose.xlu0.b32.cont [12/16] 0.0, 128
        %1264 = vxpose.xlu0.b32.cont [13/16] 0.0, 128
        %1265 = vxpose.xlu0.b32.cont [14/16] 0.0, 128
        %1266 = vxpose.xlu0.b32.cont [15/16] 0.0, 128
        %1267 = vxpose.xlu0.b32.end [16/16] 0.0, 128
        %v1268 = vpop.trf.xlu0
        %v1269 = vpop.trf.xlu0
        %v1270 = vpop.trf.xlu0
        %v1271 = vpop.trf.xlu0
        %v1272 = vpop.trf.xlu0
        %v1273 = vpop.trf.xlu0
        %v1274 = vpop.trf.xlu0
        %v1275 = vpop.trf.xlu0
        %v1276 = vpop.trf.xlu0
        %v1277 = vpop.trf.xlu0
        %v1278 = vpop.trf.xlu0
        %v1279 = vpop.trf.xlu0
        %v1280 = vpop.trf.xlu0
        %v1281 = vpop.trf.xlu0
        %v1282 = vpop.trf.xlu0
        %v1283 = vpop.trf.xlu0
        %v1284 = vpack.c.bf16 %v1237, %v1236
        %v1285 = vpack.c.bf16 %v1239, %v1238
        %v1286 = vpack.c.bf16 %v1241, %v1240
        %v1287 = vpack.c.bf16 %v1243, %v1242
        %v1288 = vpack.c.bf16 %v1245, %v1244
        %v1289 = vpack.c.bf16 %v1247, %v1246
        %v1290 = vpack.c.bf16 %v1249, %v1248
        %v1291 = vpack.c.bf16 %v1251, %v1250
        %v1292 = vpack.c.bf16 %v1269, %v1268
        %v1293 = vpack.c.bf16 %v1271, %v1270
        %v1294 = vpack.c.bf16 %v1273, %v1272
        %v1295 = vpack.c.bf16 %v1275, %v1274
        %v1296 = vpack.c.bf16 %v1277, %v1276
        %v1297 = vpack.c.bf16 %v1279, %v1278
        %v1298 = vpack.c.bf16 %v1281, %v1280
        %v1299 = vpack.c.bf16 %v1283, %v1282
        %v1300 = vpack.c.bf16 %v373, %v370
        %v1301 = vpack.c.bf16 %v379, %v376
        %v1303 = vsel %vm849, %v1284, 0
        %v1306 = vsel %vm849, %v1285, 0
        %v1309 = vsel %vm849, %v1286, 0
        %v1312 = vsel %vm849, %v1287, 0
        %v1315 = vsel %vm849, %v1288, 0
        %v1318 = vsel %vm849, %v1289, 0
        %v1321 = vsel %vm849, %v1290, 0
        %v1324 = vsel %vm849, %v1291, 0
        %v1327 = vsel %vm849, %v1292, 0
        %v1330 = vsel %vm849, %v1293, 0
        %v1333 = vsel %vm849, %v1294, 0
        %v1336 = vsel %vm849, %v1295, 0
        %v1339 = vsel %vm849, %v1296, 0
        %v1342 = vsel %vm849, %v1297, 0
        %v1345 = vsel %vm849, %v1298, 0
        %v1348 = vsel %vm849, %v1299, 0
        %1350 = vmatpush.bf16.msra.mxu0 0
        %1351 = vmatpush.bf16.msra.mxu0 0
        %1352 = vmatpush.bf16.msra.mxu0 0
        %1353 = vmatpush.bf16.msra.mxu0 0
        %1354 = vmatpush.bf16.msra.mxu0 0
        %1355 = vmatpush.bf16.msra.mxu0 0
        %1356 = vmatpush.bf16.msra.mxu0 %v1301
        %1357 = vmatpush.bf16.msra.mxu0 %v1300
        %1358 = vmatmul.bf16.gmra.mxu0 %v1303
        %v1359 = vpop.f32.mrf.mxu0
        %v1360 = vadd.f32 0.0, %v1359
        %v1361 = vpop.f32.mrf.mxu0
        %v1362 = vadd.f32 0.0, %v1361
        %1363 = vmatmul.bf16.gmra.mxu0 %v1306
        %v1364 = vpop.f32.mrf.mxu0
        %v1365 = vadd.f32 0.0, %v1364
        %v1366 = vpop.f32.mrf.mxu0
        %v1367 = vadd.f32 0.0, %v1366
        %1368 = vmatmul.bf16.gmra.mxu0 %v1309
        %v1369 = vpop.f32.mrf.mxu0
        %v1370 = vadd.f32 0.0, %v1369
        %v1371 = vpop.f32.mrf.mxu0
        %v1372 = vadd.f32 0.0, %v1371
        %1373 = vmatmul.bf16.gmra.mxu0 %v1312
        %v1374 = vpop.f32.mrf.mxu0
        %v1375 = vadd.f32 0.0, %v1374
        %v1376 = vpop.f32.mrf.mxu0
        %v1377 = vadd.f32 0.0, %v1376
        %1378 = vmatmul.bf16.gmra.mxu0 %v1315
        %v1379 = vpop.f32.mrf.mxu0
        %v1380 = vadd.f32 0.0, %v1379
        %v1381 = vpop.f32.mrf.mxu0
        %v1382 = vadd.f32 0.0, %v1381
        %1383 = vmatmul.bf16.gmra.mxu0 %v1318
        %v1384 = vpop.f32.mrf.mxu0
        %v1385 = vadd.f32 0.0, %v1384
        %v1386 = vpop.f32.mrf.mxu0
        %v1387 = vadd.f32 0.0, %v1386
        %1388 = vmatmul.bf16.gmra.mxu0 %v1321
        %v1389 = vpop.f32.mrf.mxu0
        %v1390 = vadd.f32 0.0, %v1389
        %v1391 = vpop.f32.mrf.mxu0
        %v1392 = vadd.f32 0.0, %v1391
        %1393 = vmatmul.bf16.gmra.mxu0 %v1324
        %v1394 = vpop.f32.mrf.mxu0
        %v1395 = vadd.f32 0.0, %v1394
        %v1396 = vpop.f32.mrf.mxu0
        %v1397 = vadd.f32 0.0, %v1396
        %1398 = vmatmul.bf16.gmra.mxu0 %v1327
        %v1399 = vpop.f32.mrf.mxu0
        %v1400 = vadd.f32 0.0, %v1399
        %v1401 = vpop.f32.mrf.mxu0
        %v1402 = vadd.f32 0.0, %v1401
        %1403 = vmatmul.bf16.gmra.mxu0 %v1330
        %v1404 = vpop.f32.mrf.mxu0
        %v1405 = vadd.f32 0.0, %v1404
        %v1406 = vpop.f32.mrf.mxu0
        %v1407 = vadd.f32 0.0, %v1406
        %1408 = vmatmul.bf16.gmra.mxu0 %v1333
        %v1409 = vpop.f32.mrf.mxu0
        %v1410 = vadd.f32 0.0, %v1409
        %v1411 = vpop.f32.mrf.mxu0
        %v1412 = vadd.f32 0.0, %v1411
        %1413 = vmatmul.bf16.gmra.mxu0 %v1336
        %v1414 = vpop.f32.mrf.mxu0
        %v1415 = vadd.f32 0.0, %v1414
        %v1416 = vpop.f32.mrf.mxu0
        %v1417 = vadd.f32 0.0, %v1416
        %1418 = vmatmul.bf16.gmra.mxu0 %v1339
        %v1419 = vpop.f32.mrf.mxu0
        %v1420 = vadd.f32 0.0, %v1419
        %v1421 = vpop.f32.mrf.mxu0
        %v1422 = vadd.f32 0.0, %v1421
        %1423 = vmatmul.bf16.gmra.mxu0 %v1342
        %v1424 = vpop.f32.mrf.mxu0
        %v1425 = vadd.f32 0.0, %v1424
        %v1426 = vpop.f32.mrf.mxu0
        %v1427 = vadd.f32 0.0, %v1426
        %1428 = vmatmul.bf16.gmra.mxu0 %v1345
        %v1429 = vpop.f32.mrf.mxu0
        %v1430 = vadd.f32 0.0, %v1429
        %v1431 = vpop.f32.mrf.mxu0
        %v1432 = vadd.f32 0.0, %v1431
        %1433 = vmatmul.bf16.gmra.mxu0 %v1348
        %v1434 = vpop.f32.mrf.mxu0
        %v1435 = vadd.f32 0.0, %v1434
        %v1436 = vpop.f32.mrf.mxu0
        %v1437 = vadd.f32 0.0, %v1436
        %1438 = vdwg.mxu0
        %v1439 = vmax.f32 %v1360, %v1370
        %v1440 = vmax.f32 %v1362, %v1372
        %v1441 = vmax.f32 %v1365, %v1375
        %v1442 = vmax.f32 %v1367, %v1377
        %v1443 = vmax.f32 %v1439, %v1380
        %v1444 = vmax.f32 %v1440, %v1382
        %v1445 = vmax.f32 %v1441, %v1385
        %v1446 = vmax.f32 %v1442, %v1387
        %v1447 = vmax.f32 %v1443, %v1390
        %v1448 = vmax.f32 %v1444, %v1392
        %v1449 = vmax.f32 %v1445, %v1395
        %v1450 = vmax.f32 %v1446, %v1397
        %v1451 = vmax.f32 %v1447, %v1400
        %v1452 = vmax.f32 %v1448, %v1402
        %v1453 = vmax.f32 %v1449, %v1405
        %v1454 = vmax.f32 %v1450, %v1407
        %v1455 = vmax.f32 %v1451, %v1410
        %v1456 = vmax.f32 %v1452, %v1412
        %v1457 = vmax.f32 %v1453, %v1415
        %v1458 = vmax.f32 %v1454, %v1417
        %v1459 = vmax.f32 %v1455, %v1420
        %v1460 = vmax.f32 %v1456, %v1422
        %v1461 = vmax.f32 %v1457, %v1425
        %v1462 = vmax.f32 %v1458, %v1427
        %v1463 = vmax.f32 %v1459, %v1430
        %v1464 = vmax.f32 %v1460, %v1432
        %v1465 = vmax.f32 %v1461, %v1435
        %v1466 = vmax.f32 %v1462, %v1437
        %v1467 = vmax.f32 %v1463, %v1464
        %v1468 = vmax.f32 %v1465, %v1466
        %v1469 = vmax.f32 %v1467, %v1468
        %v1470 = vrot.slane %v1469, 4
        %v1471 = vmax.f32 %v1469, %v1470
        %v1472 = vrot.slane %v1471, 2
        %v1473 = vmax.f32 %v1471, %v1472
        %v1474 = vrot.slane %v1473, 1
        %v1475 = vmax.f32 %v1473, %v1474
        %v1476 = vsub.f32 %v1360, %v1475
        %v1477 = vsub.f32 %v1362, %v1475
        %v1478 = vsub.f32 %v1365, %v1475
        %v1479 = vsub.f32 %v1367, %v1475
        %v1480 = vsub.f32 %v1370, %v1475
        %v1481 = vsub.f32 %v1372, %v1475
        %v1482 = vsub.f32 %v1375, %v1475
        %v1483 = vsub.f32 %v1377, %v1475
        %v1484 = vsub.f32 %v1380, %v1475
        %v1485 = vsub.f32 %v1382, %v1475
        %v1486 = vsub.f32 %v1385, %v1475
        %v1487 = vsub.f32 %v1387, %v1475
        %v1488 = vsub.f32 %v1390, %v1475
        %v1489 = vsub.f32 %v1392, %v1475
        %v1490 = vsub.f32 %v1395, %v1475
        %v1491 = vsub.f32 %v1397, %v1475
        %v1492 = vsub.f32 %v1400, %v1475
        %v1493 = vsub.f32 %v1402, %v1475
        %v1494 = vsub.f32 %v1405, %v1475
        %v1495 = vsub.f32 %v1407, %v1475
        %v1496 = vsub.f32 %v1410, %v1475
        %v1497 = vsub.f32 %v1412, %v1475
        %v1498 = vsub.f32 %v1415, %v1475
        %v1499 = vsub.f32 %v1417, %v1475
        %v1500 = vsub.f32 %v1420, %v1475
        %v1501 = vsub.f32 %v1422, %v1475
        %v1502 = vsub.f32 %v1425, %v1475
        %v1503 = vsub.f32 %v1427, %v1475
        %v1504 = vsub.f32 %v1430, %v1475
        %v1505 = vsub.f32 %v1432, %v1475
        %v1506 = vsub.f32 %v1435, %v1475
        %v1507 = vsub.f32 %v1437, %v1475
        %v1508 = vmul.f32 %v1476, 1.442695
        %v1509 = vpow.pop %v1508
        %v1510 = vmul.f32 %v1477, 1.442695
        %v1511 = vpow.pop %v1510
        %v1512 = vmul.f32 %v1478, 1.442695
        %v1513 = vpow.pop %v1512
        %v1514 = vmul.f32 %v1479, 1.442695
        %v1515 = vpow.pop %v1514
        %v1516 = vmul.f32 %v1480, 1.442695
        %v1517 = vpow.pop %v1516
        %v1518 = vmul.f32 %v1481, 1.442695
        %v1519 = vpow.pop %v1518
        %v1520 = vmul.f32 %v1482, 1.442695
        %v1521 = vpow.pop %v1520
        %v1522 = vmul.f32 %v1483, 1.442695
        %v1523 = vpow.pop %v1522
        %v1524 = vmul.f32 %v1484, 1.442695
        %v1525 = vpow.pop %v1524
        %v1526 = vmul.f32 %v1485, 1.442695
        %v1527 = vpow.pop %v1526
        %v1528 = vmul.f32 %v1486, 1.442695
        %v1529 = vpow.pop %v1528
        %v1530 = vmul.f32 %v1487, 1.442695
        %v1531 = vpow.pop %v1530
        %v1532 = vmul.f32 %v1488, 1.442695
        %v1533 = vpow.pop %v1532
        %v1534 = vmul.f32 %v1489, 1.442695
        %v1535 = vpow.pop %v1534
        %v1536 = vmul.f32 %v1490, 1.442695
        %v1537 = vpow.pop %v1536
        %v1538 = vmul.f32 %v1491, 1.442695
        %v1539 = vpow.pop %v1538
        %v1540 = vmul.f32 %v1492, 1.442695
        %v1541 = vpow.pop %v1540
        %v1542 = vmul.f32 %v1493, 1.442695
        %v1543 = vpow.pop %v1542
        %v1544 = vmul.f32 %v1494, 1.442695
        %v1545 = vpow.pop %v1544
        %v1546 = vmul.f32 %v1495, 1.442695
        %v1547 = vpow.pop %v1546
        %v1548 = vmul.f32 %v1496, 1.442695
        %v1549 = vpow.pop %v1548
        %v1550 = vmul.f32 %v1497, 1.442695
        %v1551 = vpow.pop %v1550
        %v1552 = vmul.f32 %v1498, 1.442695
        %v1553 = vpow.pop %v1552
        %v1554 = vmul.f32 %v1499, 1.442695
        %v1555 = vpow.pop %v1554
        %v1556 = vmul.f32 %v1500, 1.442695
        %v1557 = vpow.pop %v1556
        %v1558 = vmul.f32 %v1501, 1.442695
        %v1559 = vpow.pop %v1558
        %v1560 = vmul.f32 %v1502, 1.442695
        %v1561 = vpow.pop %v1560
        %v1562 = vmul.f32 %v1503, 1.442695
        %v1563 = vpow.pop %v1562
        %v1564 = vmul.f32 %v1504, 1.442695
        %v1565 = vpow.pop %v1564
        %v1566 = vmul.f32 %v1505, 1.442695
        %v1567 = vpow.pop %v1566
        %v1568 = vmul.f32 %v1506, 1.442695
        %v1569 = vpow.pop %v1568
        %v1570 = vmul.f32 %v1507, 1.442695
        %v1571 = vpow.pop %v1570
        %v1572 = vadd.f32 %v1509, %v1511
        %v1573 = vadd.f32 %v1572, %v1513
        %v1574 = vadd.f32 %v1573, %v1515
        %v1575 = vadd.f32 %v1574, %v1517
        %v1576 = vadd.f32 %v1575, %v1519
        %v1577 = vadd.f32 %v1576, %v1521
        %v1578 = vadd.f32 %v1577, %v1523
        %v1579 = vadd.f32 %v1578, %v1525
        %v1580 = vadd.f32 %v1579, %v1527
        %v1581 = vadd.f32 %v1580, %v1529
        %v1582 = vadd.f32 %v1581, %v1531
        %v1583 = vadd.f32 %v1582, %v1533
        %v1584 = vadd.f32 %v1583, %v1535
        %v1585 = vadd.f32 %v1584, %v1537
        %v1586 = vadd.f32 %v1585, %v1539
        %v1587 = vadd.f32 %v1586, %v1541
        %v1588 = vadd.f32 %v1587, %v1543
        %v1589 = vadd.f32 %v1588, %v1545
        %v1590 = vadd.f32 %v1589, %v1547
        %v1591 = vadd.f32 %v1590, %v1549
        %v1592 = vadd.f32 %v1591, %v1551
        %v1593 = vadd.f32 %v1592, %v1553
        %v1594 = vadd.f32 %v1593, %v1555
        %v1595 = vadd.f32 %v1594, %v1557
        %v1596 = vadd.f32 %v1595, %v1559
        %v1597 = vadd.f32 %v1596, %v1561
        %v1598 = vadd.f32 %v1597, %v1563
        %v1599 = vadd.f32 %v1598, %v1565
        %v1600 = vadd.f32 %v1599, %v1567
        %v1601 = vadd.f32 %v1600, %v1569
        %v1602 = vadd.f32 %v1601, %v1571
        %v1603 = vrot.slane %v1602, 4
        %v1604 = vadd.f32 %v1602, %v1603
        %v1605 = vrot.slane %v1604, 2
        %v1606 = vadd.f32 %v1604, %v1605
        %v1607 = vrot.slane %v1606, 1
        %v1608 = vadd.f32 %v1606, %v1607
        %v1609 = vpack.c.bf16 %v622, %v619
        %v1610 = vpack.c.bf16 %v735, %v732
        %v1611 = vpack.c.bf16 %v628, %v625
        %v1612 = vpack.c.bf16 %v741, %v738
        %v1613 = vpack.c.bf16 %v1511, %v1509
        %v1614 = vpack.c.bf16 %v1515, %v1513
        %v1615 = vpack.c.bf16 %v1519, %v1517
        %v1616 = vpack.c.bf16 %v1523, %v1521
        %v1617 = vpack.c.bf16 %v1527, %v1525
        %v1618 = vpack.c.bf16 %v1531, %v1529
        %v1619 = vpack.c.bf16 %v1535, %v1533
        %v1620 = vpack.c.bf16 %v1539, %v1537
        %v1621 = vpack.c.bf16 %v1543, %v1541
        %v1622 = vpack.c.bf16 %v1547, %v1545
        %v1623 = vpack.c.bf16 %v1551, %v1549
        %v1624 = vpack.c.bf16 %v1555, %v1553
        %v1625 = vpack.c.bf16 %v1559, %v1557
        %v1626 = vpack.c.bf16 %v1563, %v1561
        %v1627 = vpack.c.bf16 %v1567, %v1565
        %v1628 = vpack.c.bf16 %v1571, %v1569
        %1629 = vmatpush.bf16.msra.mxu0 %v1620
        %1630 = vmatpush.bf16.msra.mxu0 %v1619
        %1631 = vmatpush.bf16.msra.mxu0 %v1618
        %1632 = vmatpush.bf16.msra.mxu0 %v1617
        %1633 = vmatpush.bf16.msra.mxu0 %v1616
        %1634 = vmatpush.bf16.msra.mxu0 %v1615
        %1635 = vmatpush.bf16.msra.mxu0 %v1614
        %1636 = vmatpush.bf16.msra.mxu0 %v1613
        %1637 = vmatmul.bf16.gmra.mxu0 %v1609
        %v1638 = vpop.f32.mrf.mxu0
        %v1639 = vadd.f32 0.0, %v1638
        %v1640 = vpop.f32.mrf.mxu0
        %v1641 = vadd.f32 0.0, %v1640
        %1642 = vmatmul.bf16.gmra.mxu0 %v1611
        %v1643 = vpop.f32.mrf.mxu0
        %v1644 = vadd.f32 0.0, %v1643
        %v1645 = vpop.f32.mrf.mxu0
        %v1646 = vadd.f32 0.0, %v1645
        %1647 = vdwg.mxu0
        %1648 = vmatpush.bf16.msra.mxu0 %v1628
        %1649 = vmatpush.bf16.msra.mxu0 %v1627
        %1650 = vmatpush.bf16.msra.mxu0 %v1626
        %1651 = vmatpush.bf16.msra.mxu0 %v1625
        %1652 = vmatpush.bf16.msra.mxu0 %v1624
        %1653 = vmatpush.bf16.msra.mxu0 %v1623
        %1654 = vmatpush.bf16.msra.mxu0 %v1622
        %1655 = vmatpush.bf16.msra.mxu0 %v1621
        %1656 = vmatmul.bf16.gmra.mxu0 %v1610
        %v1657 = vpop.f32.mrf.mxu0
        %v1658 = vadd.f32 %v1639, %v1657
        %v1659 = vpop.f32.mrf.mxu0
        %v1660 = vadd.f32 %v1641, %v1659
        %1661 = vmatmul.bf16.gmra.mxu0 %v1612
        %v1662 = vpop.f32.mrf.mxu0
        %v1663 = vadd.f32 %v1644, %v1662
        %v1664 = vpop.f32.mrf.mxu0
        %v1665 = vadd.f32 %v1646, %v1664
        %1666 = vdwg.mxu0
        %v1667 = vrcp.pop %v1608
        %v1668 = vmul.f32 %v1658, %v1667
        %v1669 = vmul.f32 %v1660, %v1667
        %v1670 = vmul.f32 %v1663, %v1667
        %v1671 = vmul.f32 %v1665, %v1667
        %1672 = vxpose.xlu0.b32.start [1/16] %v583, 128
        %1673 = vxpose.xlu0.b32.cont [2/16] %v586, 128
        %1674 = vxpose.xlu0.b32.cont [3/16] %v589, 128
        %1675 = vxpose.xlu0.b32.cont [4/16] %v592, 128
        %1676 = vxpose.xlu0.b32.cont [5/16] 0.0, 128
        %1677 = vxpose.xlu0.b32.cont [6/16] 0.0, 128
        %1678 = vxpose.xlu0.b32.cont [7/16] 0.0, 128
        %1679 = vxpose.xlu0.b32.cont [8/16] 0.0, 128
        %1680 = vxpose.xlu0.b32.cont [9/16] 0.0, 128
        %1681 = vxpose.xlu0.b32.cont [10/16] 0.0, 128
        %1682 = vxpose.xlu0.b32.cont [11/16] 0.0, 128
        %1683 = vxpose.xlu0.b32.cont [12/16] 0.0, 128
        %1684 = vxpose.xlu0.b32.cont [13/16] 0.0, 128
        %1685 = vxpose.xlu0.b32.cont [14/16] 0.0, 128
        %1686 = vxpose.xlu0.b32.cont [15/16] 0.0, 128
        %1687 = vxpose.xlu0.b32.end [16/16] 0.0, 128
        %v1688 = vpop.trf.xlu0
        %v1689 = vpop.trf.xlu0
        %v1690 = vpop.trf.xlu0
        %v1691 = vpop.trf.xlu0
        %v1692 = vpop.trf.xlu0
        %v1693 = vpop.trf.xlu0
        %v1694 = vpop.trf.xlu0
        %v1695 = vpop.trf.xlu0
        %v1696 = vpop.trf.xlu0
        %v1697 = vpop.trf.xlu0
        %v1698 = vpop.trf.xlu0
        %v1699 = vpop.trf.xlu0
        %v1700 = vpop.trf.xlu0
        %v1701 = vpop.trf.xlu0
        %v1702 = vpop.trf.xlu0
        %v1703 = vpop.trf.xlu0
        %1704 = vxpose.xlu0.b32.start [1/16] %v696, 128
        %1705 = vxpose.xlu0.b32.cont [2/16] %v699, 128
        %1706 = vxpose.xlu0.b32.cont [3/16] %v702, 128
        %1707 = vxpose.xlu0.b32.cont [4/16] %v705, 128
        %1708 = vxpose.xlu0.b32.cont [5/16] 0.0, 128
        %1709 = vxpose.xlu0.b32.cont [6/16] 0.0, 128
        %1710 = vxpose.xlu0.b32.cont [7/16] 0.0, 128
        %1711 = vxpose.xlu0.b32.cont [8/16] 0.0, 128
        %1712 = vxpose.xlu0.b32.cont [9/16] 0.0, 128
        %1713 = vxpose.xlu0.b32.cont [10/16] 0.0, 128
        %1714 = vxpose.xlu0.b32.cont [11/16] 0.0, 128
        %1715 = vxpose.xlu0.b32.cont [12/16] 0.0, 128
        %1716 = vxpose.xlu0.b32.cont [13/16] 0.0, 128
        %1717 = vxpose.xlu0.b32.cont [14/16] 0.0, 128
        %1718 = vxpose.xlu0.b32.cont [15/16] 0.0, 128
        %1719 = vxpose.xlu0.b32.end [16/16] 0.0, 128
        %v1720 = vpop.trf.xlu0
        %v1721 = vpop.trf.xlu0
        %v1722 = vpop.trf.xlu0
        %v1723 = vpop.trf.xlu0
        %v1724 = vpop.trf.xlu0
        %v1725 = vpop.trf.xlu0
        %v1726 = vpop.trf.xlu0
        %v1727 = vpop.trf.xlu0
        %v1728 = vpop.trf.xlu0
        %v1729 = vpop.trf.xlu0
        %v1730 = vpop.trf.xlu0
        %v1731 = vpop.trf.xlu0
        %v1732 = vpop.trf.xlu0
        %v1733 = vpop.trf.xlu0
        %v1734 = vpop.trf.xlu0
        %v1735 = vpop.trf.xlu0
        %v1736 = vpack.c.bf16 %v1689, %v1688
        %v1737 = vpack.c.bf16 %v1691, %v1690
        %v1738 = vpack.c.bf16 %v1693, %v1692
        %v1739 = vpack.c.bf16 %v1695, %v1694
        %v1740 = vpack.c.bf16 %v1697, %v1696
        %v1741 = vpack.c.bf16 %v1699, %v1698
        %v1742 = vpack.c.bf16 %v1701, %v1700
        %v1743 = vpack.c.bf16 %v1703, %v1702
        %v1744 = vpack.c.bf16 %v1721, %v1720
        %v1745 = vpack.c.bf16 %v1723, %v1722
        %v1746 = vpack.c.bf16 %v1725, %v1724
        %v1747 = vpack.c.bf16 %v1727, %v1726
        %v1748 = vpack.c.bf16 %v1729, %v1728
        %v1749 = vpack.c.bf16 %v1731, %v1730
        %v1750 = vpack.c.bf16 %v1733, %v1732
        %v1751 = vpack.c.bf16 %v1735, %v1734
        %v1752 = vpack.c.bf16 %v385, %v382
        %v1753 = vpack.c.bf16 %v391, %v388
        %v1755 = vsel %vm849, %v1736, 0
        %v1758 = vsel %vm849, %v1737, 0
        %v1761 = vsel %vm849, %v1738, 0
        %v1764 = vsel %vm849, %v1739, 0
        %v1767 = vsel %vm849, %v1740, 0
        %v1770 = vsel %vm849, %v1741, 0
        %v1773 = vsel %vm849, %v1742, 0
        %v1776 = vsel %vm849, %v1743, 0
        %v1779 = vsel %vm849, %v1744, 0
        %v1782 = vsel %vm849, %v1745, 0
        %v1785 = vsel %vm849, %v1746, 0
        %v1788 = vsel %vm849, %v1747, 0
        %v1791 = vsel %vm849, %v1748, 0
        %v1794 = vsel %vm849, %v1749, 0
        %v1797 = vsel %vm849, %v1750, 0
        %v1800 = vsel %vm849, %v1751, 0
        %1802 = vmatpush.bf16.msra.mxu0 0
        %1803 = vmatpush.bf16.msra.mxu0 0
        %1804 = vmatpush.bf16.msra.mxu0 0
        %1805 = vmatpush.bf16.msra.mxu0 0
        %1806 = vmatpush.bf16.msra.mxu0 0
        %1807 = vmatpush.bf16.msra.mxu0 0
        %1808 = vmatpush.bf16.msra.mxu0 %v1753
        %1809 = vmatpush.bf16.msra.mxu0 %v1752
        %1810 = vmatmul.bf16.gmra.mxu0 %v1755
        %v1811 = vpop.f32.mrf.mxu0
        %v1812 = vadd.f32 0.0, %v1811
        %v1813 = vpop.f32.mrf.mxu0
        %v1814 = vadd.f32 0.0, %v1813
        %1815 = vmatmul.bf16.gmra.mxu0 %v1758
        %v1816 = vpop.f32.mrf.mxu0
        %v1817 = vadd.f32 0.0, %v1816
        %v1818 = vpop.f32.mrf.mxu0
        %v1819 = vadd.f32 0.0, %v1818
        %1820 = vmatmul.bf16.gmra.mxu0 %v1761
        %v1821 = vpop.f32.mrf.mxu0
        %v1822 = vadd.f32 0.0, %v1821
        %v1823 = vpop.f32.mrf.mxu0
        %v1824 = vadd.f32 0.0, %v1823
        %1825 = vmatmul.bf16.gmra.mxu0 %v1764
        %v1826 = vpop.f32.mrf.mxu0
        %v1827 = vadd.f32 0.0, %v1826
        %v1828 = vpop.f32.mrf.mxu0
        %v1829 = vadd.f32 0.0, %v1828
        %1830 = vmatmul.bf16.gmra.mxu0 %v1767
        %v1831 = vpop.f32.mrf.mxu0
        %v1832 = vadd.f32 0.0, %v1831
        %v1833 = vpop.f32.mrf.mxu0
        %v1834 = vadd.f32 0.0, %v1833
        %1835 = vmatmul.bf16.gmra.mxu0 %v1770
        %v1836 = vpop.f32.mrf.mxu0
        %v1837 = vadd.f32 0.0, %v1836
        %v1838 = vpop.f32.mrf.mxu0
        %v1839 = vadd.f32 0.0, %v1838
        %1840 = vmatmul.bf16.gmra.mxu0 %v1773
        %v1841 = vpop.f32.mrf.mxu0
        %v1842 = vadd.f32 0.0, %v1841
        %v1843 = vpop.f32.mrf.mxu0
        %v1844 = vadd.f32 0.0, %v1843
        %1845 = vmatmul.bf16.gmra.mxu0 %v1776
        %v1846 = vpop.f32.mrf.mxu0
        %v1847 = vadd.f32 0.0, %v1846
        %v1848 = vpop.f32.mrf.mxu0
        %v1849 = vadd.f32 0.0, %v1848
        %1850 = vmatmul.bf16.gmra.mxu0 %v1779
        %v1851 = vpop.f32.mrf.mxu0
        %v1852 = vadd.f32 0.0, %v1851
        %v1853 = vpop.f32.mrf.mxu0
        %v1854 = vadd.f32 0.0, %v1853
        %1855 = vmatmul.bf16.gmra.mxu0 %v1782
        %v1856 = vpop.f32.mrf.mxu0
        %v1857 = vadd.f32 0.0, %v1856
        %v1858 = vpop.f32.mrf.mxu0
        %v1859 = vadd.f32 0.0, %v1858
        %1860 = vmatmul.bf16.gmra.mxu0 %v1785
        %v1861 = vpop.f32.mrf.mxu0
        %v1862 = vadd.f32 0.0, %v1861
        %v1863 = vpop.f32.mrf.mxu0
        %v1864 = vadd.f32 0.0, %v1863
        %1865 = vmatmul.bf16.gmra.mxu0 %v1788
        %v1866 = vpop.f32.mrf.mxu0
        %v1867 = vadd.f32 0.0, %v1866
        %v1868 = vpop.f32.mrf.mxu0
        %v1869 = vadd.f32 0.0, %v1868
        %1870 = vmatmul.bf16.gmra.mxu0 %v1791
        %v1871 = vpop.f32.mrf.mxu0
        %v1872 = vadd.f32 0.0, %v1871
        %v1873 = vpop.f32.mrf.mxu0
        %v1874 = vadd.f32 0.0, %v1873
        %1875 = vmatmul.bf16.gmra.mxu0 %v1794
        %v1876 = vpop.f32.mrf.mxu0
        %v1877 = vadd.f32 0.0, %v1876
        %v1878 = vpop.f32.mrf.mxu0
        %v1879 = vadd.f32 0.0, %v1878
        %1880 = vmatmul.bf16.gmra.mxu0 %v1797
        %v1881 = vpop.f32.mrf.mxu0
        %v1882 = vadd.f32 0.0, %v1881
        %v1883 = vpop.f32.mrf.mxu0
        %v1884 = vadd.f32 0.0, %v1883
        %1885 = vmatmul.bf16.gmra.mxu0 %v1800
        %v1886 = vpop.f32.mrf.mxu0
        %v1887 = vadd.f32 0.0, %v1886
        %v1888 = vpop.f32.mrf.mxu0
        %v1889 = vadd.f32 0.0, %v1888
        %1890 = vdwg.mxu0
        %v1891 = vmax.f32 %v1812, %v1822
        %v1892 = vmax.f32 %v1814, %v1824
        %v1893 = vmax.f32 %v1817, %v1827
        %v1894 = vmax.f32 %v1819, %v1829
        %v1895 = vmax.f32 %v1891, %v1832
        %v1896 = vmax.f32 %v1892, %v1834
        %v1897 = vmax.f32 %v1893, %v1837
        %v1898 = vmax.f32 %v1894, %v1839
        %v1899 = vmax.f32 %v1895, %v1842
        %v1900 = vmax.f32 %v1896, %v1844
        %v1901 = vmax.f32 %v1897, %v1847
        %v1902 = vmax.f32 %v1898, %v1849
        %v1903 = vmax.f32 %v1899, %v1852
        %v1904 = vmax.f32 %v1900, %v1854
        %v1905 = vmax.f32 %v1901, %v1857
        %v1906 = vmax.f32 %v1902, %v1859
        %v1907 = vmax.f32 %v1903, %v1862
        %v1908 = vmax.f32 %v1904, %v1864
        %v1909 = vmax.f32 %v1905, %v1867
        %v1910 = vmax.f32 %v1906, %v1869
        %v1911 = vmax.f32 %v1907, %v1872
        %v1912 = vmax.f32 %v1908, %v1874
        %v1913 = vmax.f32 %v1909, %v1877
        %v1914 = vmax.f32 %v1910, %v1879
        %v1915 = vmax.f32 %v1911, %v1882
        %v1916 = vmax.f32 %v1912, %v1884
        %v1917 = vmax.f32 %v1913, %v1887
        %v1918 = vmax.f32 %v1914, %v1889
        %v1919 = vmax.f32 %v1915, %v1916
        %v1920 = vmax.f32 %v1917, %v1918
        %v1921 = vmax.f32 %v1919, %v1920
        %v1922 = vrot.slane %v1921, 4
        %v1923 = vmax.f32 %v1921, %v1922
        %v1924 = vrot.slane %v1923, 2
        %v1925 = vmax.f32 %v1923, %v1924
        %v1926 = vrot.slane %v1925, 1
        %v1927 = vmax.f32 %v1925, %v1926
        %v1928 = vsub.f32 %v1812, %v1927
        %v1929 = vsub.f32 %v1814, %v1927
        %v1930 = vsub.f32 %v1817, %v1927
        %v1931 = vsub.f32 %v1819, %v1927
        %v1932 = vsub.f32 %v1822, %v1927
        %v1933 = vsub.f32 %v1824, %v1927
        %v1934 = vsub.f32 %v1827, %v1927
        %v1935 = vsub.f32 %v1829, %v1927
        %v1936 = vsub.f32 %v1832, %v1927
        %v1937 = vsub.f32 %v1834, %v1927
        %v1938 = vsub.f32 %v1837, %v1927
        %v1939 = vsub.f32 %v1839, %v1927
        %v1940 = vsub.f32 %v1842, %v1927
        %v1941 = vsub.f32 %v1844, %v1927
        %v1942 = vsub.f32 %v1847, %v1927
        %v1943 = vsub.f32 %v1849, %v1927
        %v1944 = vsub.f32 %v1852, %v1927
        %v1945 = vsub.f32 %v1854, %v1927
        %v1946 = vsub.f32 %v1857, %v1927
        %v1947 = vsub.f32 %v1859, %v1927
        %v1948 = vsub.f32 %v1862, %v1927
        %v1949 = vsub.f32 %v1864, %v1927
        %v1950 = vsub.f32 %v1867, %v1927
        %v1951 = vsub.f32 %v1869, %v1927
        %v1952 = vsub.f32 %v1872, %v1927
        %v1953 = vsub.f32 %v1874, %v1927
        %v1954 = vsub.f32 %v1877, %v1927
        %v1955 = vsub.f32 %v1879, %v1927
        %v1956 = vsub.f32 %v1882, %v1927
        %v1957 = vsub.f32 %v1884, %v1927
        %v1958 = vsub.f32 %v1887, %v1927
        %v1959 = vsub.f32 %v1889, %v1927
        %v1960 = vmul.f32 %v1928, 1.442695
        %v1961 = vpow.pop %v1960
        %v1962 = vmul.f32 %v1929, 1.442695
        %v1963 = vpow.pop %v1962
        %v1964 = vmul.f32 %v1930, 1.442695
        %v1965 = vpow.pop %v1964
        %v1966 = vmul.f32 %v1931, 1.442695
        %v1967 = vpow.pop %v1966
        %v1968 = vmul.f32 %v1932, 1.442695
        %v1969 = vpow.pop %v1968
        %v1970 = vmul.f32 %v1933, 1.442695
        %v1971 = vpow.pop %v1970
        %v1972 = vmul.f32 %v1934, 1.442695
        %v1973 = vpow.pop %v1972
        %v1974 = vmul.f32 %v1935, 1.442695
        %v1975 = vpow.pop %v1974
        %v1976 = vmul.f32 %v1936, 1.442695
        %v1977 = vpow.pop %v1976
        %v1978 = vmul.f32 %v1937, 1.442695
        %v1979 = vpow.pop %v1978
        %v1980 = vmul.f32 %v1938, 1.442695
        %v1981 = vpow.pop %v1980
        %v1982 = vmul.f32 %v1939, 1.442695
        %v1983 = vpow.pop %v1982
        %v1984 = vmul.f32 %v1940, 1.442695
        %v1985 = vpow.pop %v1984
        %v1986 = vmul.f32 %v1941, 1.442695
        %v1987 = vpow.pop %v1986
        %v1988 = vmul.f32 %v1942, 1.442695
        %v1989 = vpow.pop %v1988
        %v1990 = vmul.f32 %v1943, 1.442695
        %v1991 = vpow.pop %v1990
        %v1992 = vmul.f32 %v1944, 1.442695
        %v1993 = vpow.pop %v1992
        %v1994 = vmul.f32 %v1945, 1.442695
        %v1995 = vpow.pop %v1994
        %v1996 = vmul.f32 %v1946, 1.442695
        %v1997 = vpow.pop %v1996
        %v1998 = vmul.f32 %v1947, 1.442695
        %v1999 = vpow.pop %v1998
        %v2000 = vmul.f32 %v1948, 1.442695
        %v2001 = vpow.pop %v2000
        %v2002 = vmul.f32 %v1949, 1.442695
        %v2003 = vpow.pop %v2002
        %v2004 = vmul.f32 %v1950, 1.442695
        %v2005 = vpow.pop %v2004
        %v2006 = vmul.f32 %v1951, 1.442695
        %v2007 = vpow.pop %v2006
        %v2008 = vmul.f32 %v1952, 1.442695
        %v2009 = vpow.pop %v2008
        %v2010 = vmul.f32 %v1953, 1.442695
        %v2011 = vpow.pop %v2010
        %v2012 = vmul.f32 %v1954, 1.442695
        %v2013 = vpow.pop %v2012
        %v2014 = vmul.f32 %v1955, 1.442695
        %v2015 = vpow.pop %v2014
        %v2016 = vmul.f32 %v1956, 1.442695
        %v2017 = vpow.pop %v2016
        %v2018 = vmul.f32 %v1957, 1.442695
        %v2019 = vpow.pop %v2018
        %v2020 = vmul.f32 %v1958, 1.442695
        %v2021 = vpow.pop %v2020
        %v2022 = vmul.f32 %v1959, 1.442695
        %v2023 = vpow.pop %v2022
        %v2024 = vadd.f32 %v1961, %v1963
        %v2025 = vadd.f32 %v2024, %v1965
        %v2026 = vadd.f32 %v2025, %v1967
        %v2027 = vadd.f32 %v2026, %v1969
        %v2028 = vadd.f32 %v2027, %v1971
        %v2029 = vadd.f32 %v2028, %v1973
        %v2030 = vadd.f32 %v2029, %v1975
        %v2031 = vadd.f32 %v2030, %v1977
        %v2032 = vadd.f32 %v2031, %v1979
        %v2033 = vadd.f32 %v2032, %v1981
        %v2034 = vadd.f32 %v2033, %v1983
        %v2035 = vadd.f32 %v2034, %v1985
        %v2036 = vadd.f32 %v2035, %v1987
        %v2037 = vadd.f32 %v2036, %v1989
        %v2038 = vadd.f32 %v2037, %v1991
        %v2039 = vadd.f32 %v2038, %v1993
        %v2040 = vadd.f32 %v2039, %v1995
        %v2041 = vadd.f32 %v2040, %v1997
        %v2042 = vadd.f32 %v2041, %v1999
        %v2043 = vadd.f32 %v2042, %v2001
        %v2044 = vadd.f32 %v2043, %v2003
        %v2045 = vadd.f32 %v2044, %v2005
        %v2046 = vadd.f32 %v2045, %v2007
        %v2047 = vadd.f32 %v2046, %v2009
        %v2048 = vadd.f32 %v2047, %v2011
        %v2049 = vadd.f32 %v2048, %v2013
        %v2050 = vadd.f32 %v2049, %v2015
        %v2051 = vadd.f32 %v2050, %v2017
        %v2052 = vadd.f32 %v2051, %v2019
        %v2053 = vadd.f32 %v2052, %v2021
        %v2054 = vadd.f32 %v2053, %v2023
        %v2055 = vrot.slane %v2054, 4
        %v2056 = vadd.f32 %v2054, %v2055
        %v2057 = vrot.slane %v2056, 2
        %v2058 = vadd.f32 %v2056, %v2057
        %v2059 = vrot.slane %v2058, 1
        %v2060 = vadd.f32 %v2058, %v2059
        %v2061 = vpack.c.bf16 %v634, %v631
        %v2062 = vpack.c.bf16 %v747, %v744
        %v2063 = vpack.c.bf16 %v640, %v637
        %v2064 = vpack.c.bf16 %v753, %v750
        %v2065 = vpack.c.bf16 %v1963, %v1961
        %v2066 = vpack.c.bf16 %v1967, %v1965
        %v2067 = vpack.c.bf16 %v1971, %v1969
        %v2068 = vpack.c.bf16 %v1975, %v1973
        %v2069 = vpack.c.bf16 %v1979, %v1977
        %v2070 = vpack.c.bf16 %v1983, %v1981
        %v2071 = vpack.c.bf16 %v1987, %v1985
        %v2072 = vpack.c.bf16 %v1991, %v1989
        %v2073 = vpack.c.bf16 %v1995, %v1993
        %v2074 = vpack.c.bf16 %v1999, %v1997
        %v2075 = vpack.c.bf16 %v2003, %v2001
        %v2076 = vpack.c.bf16 %v2007, %v2005
        %v2077 = vpack.c.bf16 %v2011, %v2009
        %v2078 = vpack.c.bf16 %v2015, %v2013
        %v2079 = vpack.c.bf16 %v2019, %v2017
        %v2080 = vpack.c.bf16 %v2023, %v2021
        %2081 = vmatpush.bf16.msra.mxu0 %v2072
        %2082 = vmatpush.bf16.msra.mxu0 %v2071
        %2083 = vmatpush.bf16.msra.mxu0 %v2070
        %2084 = vmatpush.bf16.msra.mxu0 %v2069
        %2085 = vmatpush.bf16.msra.mxu0 %v2068
        %2086 = vmatpush.bf16.msra.mxu0 %v2067
        %2087 = vmatpush.bf16.msra.mxu0 %v2066
        %2088 = vmatpush.bf16.msra.mxu0 %v2065
        %2089 = vmatmul.bf16.gmra.mxu0 %v2061
        %v2090 = vpop.f32.mrf.mxu0
        %v2091 = vadd.f32 0.0, %v2090
        %v2092 = vpop.f32.mrf.mxu0
        %v2093 = vadd.f32 0.0, %v2092
        %2094 = vmatmul.bf16.gmra.mxu0 %v2063
        %v2095 = vpop.f32.mrf.mxu0
        %v2096 = vadd.f32 0.0, %v2095
        %v2097 = vpop.f32.mrf.mxu0
        %v2098 = vadd.f32 0.0, %v2097
        %2099 = vdwg.mxu0
        %2100 = vmatpush.bf16.msra.mxu0 %v2080
        %2101 = vmatpush.bf16.msra.mxu0 %v2079
        %2102 = vmatpush.bf16.msra.mxu0 %v2078
        %2103 = vmatpush.bf16.msra.mxu0 %v2077
        %2104 = vmatpush.bf16.msra.mxu0 %v2076
        %2105 = vmatpush.bf16.msra.mxu0 %v2075
        %2106 = vmatpush.bf16.msra.mxu0 %v2074
        %2107 = vmatpush.bf16.msra.mxu0 %v2073
        %2108 = vmatmul.bf16.gmra.mxu0 %v2062
        %v2109 = vpop.f32.mrf.mxu0
        %v2110 = vadd.f32 %v2091, %v2109
        %v2111 = vpop.f32.mrf.mxu0
        %v2112 = vadd.f32 %v2093, %v2111
        %2113 = vmatmul.bf16.gmra.mxu0 %v2064
        %v2114 = vpop.f32.mrf.mxu0
        %v2115 = vadd.f32 %v2096, %v2114
        %v2116 = vpop.f32.mrf.mxu0
        %v2117 = vadd.f32 %v2098, %v2116
        %2118 = vdwg.mxu0
        %v2119 = vrcp.pop %v2060
        %v2120 = vmul.f32 %v2110, %v2119
        %v2121 = vmul.f32 %v2112, %v2119
        %v2122 = vmul.f32 %v2115, %v2119
        %v2123 = vmul.f32 %v2117, %v2119
        %2124 = vxpose.xlu0.b32.start [1/16] %v595, 128
        %2125 = vxpose.xlu0.b32.cont [2/16] %v598, 128
        %2126 = vxpose.xlu0.b32.cont [3/16] %v601, 128
        %2127 = vxpose.xlu0.b32.cont [4/16] %v604, 128
        %2128 = vxpose.xlu0.b32.cont [5/16] 0.0, 128
        %2129 = vxpose.xlu0.b32.cont [6/16] 0.0, 128
        %2130 = vxpose.xlu0.b32.cont [7/16] 0.0, 128
        %2131 = vxpose.xlu0.b32.cont [8/16] 0.0, 128
        %2132 = vxpose.xlu0.b32.cont [9/16] 0.0, 128
        %2133 = vxpose.xlu0.b32.cont [10/16] 0.0, 128
        %2134 = vxpose.xlu0.b32.cont [11/16] 0.0, 128
        %2135 = vxpose.xlu0.b32.cont [12/16] 0.0, 128
        %2136 = vxpose.xlu0.b32.cont [13/16] 0.0, 128
        %2137 = vxpose.xlu0.b32.cont [14/16] 0.0, 128
        %2138 = vxpose.xlu0.b32.cont [15/16] 0.0, 128
        %2139 = vxpose.xlu0.b32.end [16/16] 0.0, 128
        %v2140 = vpop.trf.xlu0
        %v2141 = vpop.trf.xlu0
        %v2142 = vpop.trf.xlu0
        %v2143 = vpop.trf.xlu0
        %v2144 = vpop.trf.xlu0
        %v2145 = vpop.trf.xlu0
        %v2146 = vpop.trf.xlu0
        %v2147 = vpop.trf.xlu0
        %v2148 = vpop.trf.xlu0
        %v2149 = vpop.trf.xlu0
        %v2150 = vpop.trf.xlu0
        %v2151 = vpop.trf.xlu0
        %v2152 = vpop.trf.xlu0
        %v2153 = vpop.trf.xlu0
        %v2154 = vpop.trf.xlu0
        %v2155 = vpop.trf.xlu0
        %2156 = vxpose.xlu0.b32.start [1/16] %v708, 128
        %2157 = vxpose.xlu0.b32.cont [2/16] %v711, 128
        %2158 = vxpose.xlu0.b32.cont [3/16] %v714, 128
        %2159 = vxpose.xlu0.b32.cont [4/16] %v717, 128
        %2160 = vxpose.xlu0.b32.cont [5/16] 0.0, 128
        %2161 = vxpose.xlu0.b32.cont [6/16] 0.0, 128
        %2162 = vxpose.xlu0.b32.cont [7/16] 0.0, 128
        %2163 = vxpose.xlu0.b32.cont [8/16] 0.0, 128
        %2164 = vxpose.xlu0.b32.cont [9/16] 0.0, 128
        %2165 = vxpose.xlu0.b32.cont [10/16] 0.0, 128
        %2166 = vxpose.xlu0.b32.cont [11/16] 0.0, 128
        %2167 = vxpose.xlu0.b32.cont [12/16] 0.0, 128
        %2168 = vxpose.xlu0.b32.cont [13/16] 0.0, 128
        %2169 = vxpose.xlu0.b32.cont [14/16] 0.0, 128
        %2170 = vxpose.xlu0.b32.cont [15/16] 0.0, 128
        %2171 = vxpose.xlu0.b32.end [16/16] 0.0, 128
        %v2172 = vpop.trf.xlu0
        %v2173 = vpop.trf.xlu0
        %v2174 = vpop.trf.xlu0
        %v2175 = vpop.trf.xlu0
        %v2176 = vpop.trf.xlu0
        %v2177 = vpop.trf.xlu0
        %v2178 = vpop.trf.xlu0
        %v2179 = vpop.trf.xlu0
        %v2180 = vpop.trf.xlu0
        %v2181 = vpop.trf.xlu0
        %v2182 = vpop.trf.xlu0
        %v2183 = vpop.trf.xlu0
        %v2184 = vpop.trf.xlu0
        %v2185 = vpop.trf.xlu0
        %v2186 = vpop.trf.xlu0
        %v2187 = vpop.trf.xlu0
        %v2188 = vpack.c.bf16 %v2141, %v2140
        %v2189 = vpack.c.bf16 %v2143, %v2142
        %v2190 = vpack.c.bf16 %v2145, %v2144
        %v2191 = vpack.c.bf16 %v2147, %v2146
        %v2192 = vpack.c.bf16 %v2149, %v2148
        %v2193 = vpack.c.bf16 %v2151, %v2150
        %v2194 = vpack.c.bf16 %v2153, %v2152
        %v2195 = vpack.c.bf16 %v2155, %v2154
        %v2196 = vpack.c.bf16 %v2173, %v2172
        %v2197 = vpack.c.bf16 %v2175, %v2174
        %v2198 = vpack.c.bf16 %v2177, %v2176
        %v2199 = vpack.c.bf16 %v2179, %v2178
        %v2200 = vpack.c.bf16 %v2181, %v2180
        %v2201 = vpack.c.bf16 %v2183, %v2182
        %v2202 = vpack.c.bf16 %v2185, %v2184
        %v2203 = vpack.c.bf16 %v2187, %v2186
        %v2204 = vpack.c.bf16 %v397, %v394
        %v2205 = vpack.c.bf16 %v403, %v400
        %v2207 = vsel %vm849, %v2188, 0
        %v2210 = vsel %vm849, %v2189, 0
        %v2213 = vsel %vm849, %v2190, 0
        %v2216 = vsel %vm849, %v2191, 0
        %v2219 = vsel %vm849, %v2192, 0
        %v2222 = vsel %vm849, %v2193, 0
        %v2225 = vsel %vm849, %v2194, 0
        %v2228 = vsel %vm849, %v2195, 0
        %v2231 = vsel %vm849, %v2196, 0
        %v2234 = vsel %vm849, %v2197, 0
        %v2237 = vsel %vm849, %v2198, 0
        %v2240 = vsel %vm849, %v2199, 0
        %v2243 = vsel %vm849, %v2200, 0
        %v2246 = vsel %vm849, %v2201, 0
        %v2249 = vsel %vm849, %v2202, 0
        %v2252 = vsel %vm849, %v2203, 0
        %2254 = vmatpush.bf16.msra.mxu0 0
        %2255 = vmatpush.bf16.msra.mxu0 0
        %2256 = vmatpush.bf16.msra.mxu0 0
        %2257 = vmatpush.bf16.msra.mxu0 0
        %2258 = vmatpush.bf16.msra.mxu0 0
        %2259 = vmatpush.bf16.msra.mxu0 0
        %2260 = vmatpush.bf16.msra.mxu0 %v2205
        %2261 = vmatpush.bf16.msra.mxu0 %v2204
        %2262 = vmatmul.bf16.gmra.mxu0 %v2207
        %v2263 = vpop.f32.mrf.mxu0
        %v2264 = vadd.f32 0.0, %v2263
        %v2265 = vpop.f32.mrf.mxu0
        %v2266 = vadd.f32 0.0, %v2265
        %2267 = vmatmul.bf16.gmra.mxu0 %v2210
        %v2268 = vpop.f32.mrf.mxu0
        %v2269 = vadd.f32 0.0, %v2268
        %v2270 = vpop.f32.mrf.mxu0
        %v2271 = vadd.f32 0.0, %v2270
        %2272 = vmatmul.bf16.gmra.mxu0 %v2213
        %v2273 = vpop.f32.mrf.mxu0
        %v2274 = vadd.f32 0.0, %v2273
        %v2275 = vpop.f32.mrf.mxu0
        %v2276 = vadd.f32 0.0, %v2275
        %2277 = vmatmul.bf16.gmra.mxu0 %v2216
        %v2278 = vpop.f32.mrf.mxu0
        %v2279 = vadd.f32 0.0, %v2278
        %v2280 = vpop.f32.mrf.mxu0
        %v2281 = vadd.f32 0.0, %v2280
        %2282 = vmatmul.bf16.gmra.mxu0 %v2219
        %v2283 = vpop.f32.mrf.mxu0
        %v2284 = vadd.f32 0.0, %v2283
        %v2285 = vpop.f32.mrf.mxu0
        %v2286 = vadd.f32 0.0, %v2285
        %2287 = vmatmul.bf16.gmra.mxu0 %v2222
        %v2288 = vpop.f32.mrf.mxu0
        %v2289 = vadd.f32 0.0, %v2288
        %v2290 = vpop.f32.mrf.mxu0
        %v2291 = vadd.f32 0.0, %v2290
        %2292 = vmatmul.bf16.gmra.mxu0 %v2225
        %v2293 = vpop.f32.mrf.mxu0
        %v2294 = vadd.f32 0.0, %v2293
        %v2295 = vpop.f32.mrf.mxu0
        %v2296 = vadd.f32 0.0, %v2295
        %2297 = vmatmul.bf16.gmra.mxu0 %v2228
        %v2298 = vpop.f32.mrf.mxu0
        %v2299 = vadd.f32 0.0, %v2298
        %v2300 = vpop.f32.mrf.mxu0
        %v2301 = vadd.f32 0.0, %v2300
        %2302 = vmatmul.bf16.gmra.mxu0 %v2231
        %v2303 = vpop.f32.mrf.mxu0
        %v2304 = vadd.f32 0.0, %v2303
        %v2305 = vpop.f32.mrf.mxu0
        %v2306 = vadd.f32 0.0, %v2305
        %2307 = vmatmul.bf16.gmra.mxu0 %v2234
        %v2308 = vpop.f32.mrf.mxu0
        %v2309 = vadd.f32 0.0, %v2308
        %v2310 = vpop.f32.mrf.mxu0
        %v2311 = vadd.f32 0.0, %v2310
        %2312 = vmatmul.bf16.gmra.mxu0 %v2237
        %v2313 = vpop.f32.mrf.mxu0
        %v2314 = vadd.f32 0.0, %v2313
        %v2315 = vpop.f32.mrf.mxu0
        %v2316 = vadd.f32 0.0, %v2315
        %2317 = vmatmul.bf16.gmra.mxu0 %v2240
        %v2318 = vpop.f32.mrf.mxu0
        %v2319 = vadd.f32 0.0, %v2318
        %v2320 = vpop.f32.mrf.mxu0
        %v2321 = vadd.f32 0.0, %v2320
        %2322 = vmatmul.bf16.gmra.mxu0 %v2243
        %v2323 = vpop.f32.mrf.mxu0
        %v2324 = vadd.f32 0.0, %v2323
        %v2325 = vpop.f32.mrf.mxu0
        %v2326 = vadd.f32 0.0, %v2325
        %2327 = vmatmul.bf16.gmra.mxu0 %v2246
        %v2328 = vpop.f32.mrf.mxu0
        %v2329 = vadd.f32 0.0, %v2328
        %v2330 = vpop.f32.mrf.mxu0
        %v2331 = vadd.f32 0.0, %v2330
        %2332 = vmatmul.bf16.gmra.mxu0 %v2249
        %v2333 = vpop.f32.mrf.mxu0
        %v2334 = vadd.f32 0.0, %v2333
        %v2335 = vpop.f32.mrf.mxu0
        %v2336 = vadd.f32 0.0, %v2335
        %2337 = vmatmul.bf16.gmra.mxu0 %v2252
        %v2338 = vpop.f32.mrf.mxu0
        %v2339 = vadd.f32 0.0, %v2338
        %v2340 = vpop.f32.mrf.mxu0
        %v2341 = vadd.f32 0.0, %v2340
        %2342 = vdwg.mxu0
        %v2343 = vmax.f32 %v2264, %v2274
        %v2344 = vmax.f32 %v2266, %v2276
        %v2345 = vmax.f32 %v2269, %v2279
        %v2346 = vmax.f32 %v2271, %v2281
        %v2347 = vmax.f32 %v2343, %v2284
        %v2348 = vmax.f32 %v2344, %v2286
        %v2349 = vmax.f32 %v2345, %v2289
        %v2350 = vmax.f32 %v2346, %v2291
        %v2351 = vmax.f32 %v2347, %v2294
        %v2352 = vmax.f32 %v2348, %v2296
        %v2353 = vmax.f32 %v2349, %v2299
        %v2354 = vmax.f32 %v2350, %v2301
        %v2355 = vmax.f32 %v2351, %v2304
        %v2356 = vmax.f32 %v2352, %v2306
        %v2357 = vmax.f32 %v2353, %v2309
        %v2358 = vmax.f32 %v2354, %v2311
        %v2359 = vmax.f32 %v2355, %v2314
        %v2360 = vmax.f32 %v2356, %v2316
        %v2361 = vmax.f32 %v2357, %v2319
        %v2362 = vmax.f32 %v2358, %v2321
        %v2363 = vmax.f32 %v2359, %v2324
        %v2364 = vmax.f32 %v2360, %v2326
        %v2365 = vmax.f32 %v2361, %v2329
        %v2366 = vmax.f32 %v2362, %v2331
        %v2367 = vmax.f32 %v2363, %v2334
        %v2368 = vmax.f32 %v2364, %v2336
        %v2369 = vmax.f32 %v2365, %v2339
        %v2370 = vmax.f32 %v2366, %v2341
        %v2371 = vmax.f32 %v2367, %v2368
        %v2372 = vmax.f32 %v2369, %v2370
        %v2373 = vmax.f32 %v2371, %v2372
        %v2374 = vrot.slane %v2373, 4
        %v2375 = vmax.f32 %v2373, %v2374
        %v2376 = vrot.slane %v2375, 2
        %v2377 = vmax.f32 %v2375, %v2376
        %v2378 = vrot.slane %v2377, 1
        %v2379 = vmax.f32 %v2377, %v2378
        %v2380 = vsub.f32 %v2264, %v2379
        %v2381 = vsub.f32 %v2266, %v2379
        %v2382 = vsub.f32 %v2269, %v2379
        %v2383 = vsub.f32 %v2271, %v2379
        %v2384 = vsub.f32 %v2274, %v2379
        %v2385 = vsub.f32 %v2276, %v2379
        %v2386 = vsub.f32 %v2279, %v2379
        %v2387 = vsub.f32 %v2281, %v2379
        %v2388 = vsub.f32 %v2284, %v2379
        %v2389 = vsub.f32 %v2286, %v2379
        %v2390 = vsub.f32 %v2289, %v2379
        %v2391 = vsub.f32 %v2291, %v2379
        %v2392 = vsub.f32 %v2294, %v2379
        %v2393 = vsub.f32 %v2296, %v2379
        %v2394 = vsub.f32 %v2299, %v2379
        %v2395 = vsub.f32 %v2301, %v2379
        %v2396 = vsub.f32 %v2304, %v2379
        %v2397 = vsub.f32 %v2306, %v2379
        %v2398 = vsub.f32 %v2309, %v2379
        %v2399 = vsub.f32 %v2311, %v2379
        %v2400 = vsub.f32 %v2314, %v2379
        %v2401 = vsub.f32 %v2316, %v2379
        %v2402 = vsub.f32 %v2319, %v2379
        %v2403 = vsub.f32 %v2321, %v2379
        %v2404 = vsub.f32 %v2324, %v2379
        %v2405 = vsub.f32 %v2326, %v2379
        %v2406 = vsub.f32 %v2329, %v2379
        %v2407 = vsub.f32 %v2331, %v2379
        %v2408 = vsub.f32 %v2334, %v2379
        %v2409 = vsub.f32 %v2336, %v2379
        %v2410 = vsub.f32 %v2339, %v2379
        %v2411 = vsub.f32 %v2341, %v2379
        %v2412 = vmul.f32 %v2380, 1.442695
        %v2413 = vpow.pop %v2412
        %v2414 = vmul.f32 %v2381, 1.442695
        %v2415 = vpow.pop %v2414
        %v2416 = vmul.f32 %v2382, 1.442695
        %v2417 = vpow.pop %v2416
        %v2418 = vmul.f32 %v2383, 1.442695
        %v2419 = vpow.pop %v2418
        %v2420 = vmul.f32 %v2384, 1.442695
        %v2421 = vpow.pop %v2420
        %v2422 = vmul.f32 %v2385, 1.442695
        %v2423 = vpow.pop %v2422
        %v2424 = vmul.f32 %v2386, 1.442695
        %v2425 = vpow.pop %v2424
        %v2426 = vmul.f32 %v2387, 1.442695
        %v2427 = vpow.pop %v2426
        %v2428 = vmul.f32 %v2388, 1.442695
        %v2429 = vpow.pop %v2428
        %v2430 = vmul.f32 %v2389, 1.442695
        %v2431 = vpow.pop %v2430
        %v2432 = vmul.f32 %v2390, 1.442695
        %v2433 = vpow.pop %v2432
        %v2434 = vmul.f32 %v2391, 1.442695
        %v2435 = vpow.pop %v2434
        %v2436 = vmul.f32 %v2392, 1.442695
        %v2437 = vpow.pop %v2436
        %v2438 = vmul.f32 %v2393, 1.442695
        %v2439 = vpow.pop %v2438
        %v2440 = vmul.f32 %v2394, 1.442695
        %v2441 = vpow.pop %v2440
        %v2442 = vmul.f32 %v2395, 1.442695
        %v2443 = vpow.pop %v2442
        %v2444 = vmul.f32 %v2396, 1.442695
        %v2445 = vpow.pop %v2444
        %v2446 = vmul.f32 %v2397, 1.442695
        %v2447 = vpow.pop %v2446
        %v2448 = vmul.f32 %v2398, 1.442695
        %v2449 = vpow.pop %v2448
        %v2450 = vmul.f32 %v2399, 1.442695
        %v2451 = vpow.pop %v2450
        %v2452 = vmul.f32 %v2400, 1.442695
        %v2453 = vpow.pop %v2452
        %v2454 = vmul.f32 %v2401, 1.442695
        %v2455 = vpow.pop %v2454
        %v2456 = vmul.f32 %v2402, 1.442695
        %v2457 = vpow.pop %v2456
        %v2458 = vmul.f32 %v2403, 1.442695
        %v2459 = vpow.pop %v2458
        %v2460 = vmul.f32 %v2404, 1.442695
        %v2461 = vpow.pop %v2460
        %v2462 = vmul.f32 %v2405, 1.442695
        %v2463 = vpow.pop %v2462
        %v2464 = vmul.f32 %v2406, 1.442695
        %v2465 = vpow.pop %v2464
        %v2466 = vmul.f32 %v2407, 1.442695
        %v2467 = vpow.pop %v2466
        %v2468 = vmul.f32 %v2408, 1.442695
        %v2469 = vpow.pop %v2468
        %v2470 = vmul.f32 %v2409, 1.442695
        %v2471 = vpow.pop %v2470
        %v2472 = vmul.f32 %v2410, 1.442695
        %v2473 = vpow.pop %v2472
        %v2474 = vmul.f32 %v2411, 1.442695
        %v2475 = vpow.pop %v2474
        %v2476 = vadd.f32 %v2413, %v2415
        %v2477 = vadd.f32 %v2476, %v2417
        %v2478 = vadd.f32 %v2477, %v2419
        %v2479 = vadd.f32 %v2478, %v2421
        %v2480 = vadd.f32 %v2479, %v2423
        %v2481 = vadd.f32 %v2480, %v2425
        %v2482 = vadd.f32 %v2481, %v2427
        %v2483 = vadd.f32 %v2482, %v2429
        %v2484 = vadd.f32 %v2483, %v2431
        %v2485 = vadd.f32 %v2484, %v2433
        %v2486 = vadd.f32 %v2485, %v2435
        %v2487 = vadd.f32 %v2486, %v2437
        %v2488 = vadd.f32 %v2487, %v2439
        %v2489 = vadd.f32 %v2488, %v2441
        %v2490 = vadd.f32 %v2489, %v2443
        %v2491 = vadd.f32 %v2490, %v2445
        %v2492 = vadd.f32 %v2491, %v2447
        %v2493 = vadd.f32 %v2492, %v2449
        %v2494 = vadd.f32 %v2493, %v2451
        %v2495 = vadd.f32 %v2494, %v2453
        %v2496 = vadd.f32 %v2495, %v2455
        %v2497 = vadd.f32 %v2496, %v2457
        %v2498 = vadd.f32 %v2497, %v2459
        %v2499 = vadd.f32 %v2498, %v2461
        %v2500 = vadd.f32 %v2499, %v2463
        %v2501 = vadd.f32 %v2500, %v2465
        %v2502 = vadd.f32 %v2501, %v2467
        %v2503 = vadd.f32 %v2502, %v2469
        %v2504 = vadd.f32 %v2503, %v2471
        %v2505 = vadd.f32 %v2504, %v2473
        %v2506 = vadd.f32 %v2505, %v2475
        %v2507 = vrot.slane %v2506, 4
        %v2508 = vadd.f32 %v2506, %v2507
        %v2509 = vrot.slane %v2508, 2
        %v2510 = vadd.f32 %v2508, %v2509
        %v2511 = vrot.slane %v2510, 1
        %v2512 = vadd.f32 %v2510, %v2511
        %v2513 = vpack.c.bf16 %v646, %v643
        %v2514 = vpack.c.bf16 %v759, %v756
        %v2515 = vpack.c.bf16 %v652, %v649
        %v2516 = vpack.c.bf16 %v765, %v762
        %v2517 = vpack.c.bf16 %v2415, %v2413
        %v2518 = vpack.c.bf16 %v2419, %v2417
        %v2519 = vpack.c.bf16 %v2423, %v2421
        %v2520 = vpack.c.bf16 %v2427, %v2425
        %v2521 = vpack.c.bf16 %v2431, %v2429
        %v2522 = vpack.c.bf16 %v2435, %v2433
        %v2523 = vpack.c.bf16 %v2439, %v2437
        %v2524 = vpack.c.bf16 %v2443, %v2441
        %v2525 = vpack.c.bf16 %v2447, %v2445
        %v2526 = vpack.c.bf16 %v2451, %v2449
        %v2527 = vpack.c.bf16 %v2455, %v2453
        %v2528 = vpack.c.bf16 %v2459, %v2457
        %v2529 = vpack.c.bf16 %v2463, %v2461
        %v2530 = vpack.c.bf16 %v2467, %v2465
        %v2531 = vpack.c.bf16 %v2471, %v2469
        %v2532 = vpack.c.bf16 %v2475, %v2473
        %2533 = vmatpush.bf16.msra.mxu0 %v2524
        %2534 = vmatpush.bf16.msra.mxu0 %v2523
        %2535 = vmatpush.bf16.msra.mxu0 %v2522
        %2536 = vmatpush.bf16.msra.mxu0 %v2521
        %2537 = vmatpush.bf16.msra.mxu0 %v2520
        %2538 = vmatpush.bf16.msra.mxu0 %v2519
        %2539 = vmatpush.bf16.msra.mxu0 %v2518
        %2540 = vmatpush.bf16.msra.mxu0 %v2517
        %2541 = vmatmul.bf16.gmra.mxu0 %v2513
        %v2542 = vpop.f32.mrf.mxu0
        %v2543 = vadd.f32 0.0, %v2542
        %v2544 = vpop.f32.mrf.mxu0
        %v2545 = vadd.f32 0.0, %v2544
        %2546 = vmatmul.bf16.gmra.mxu0 %v2515
        %v2547 = vpop.f32.mrf.mxu0
        %v2548 = vadd.f32 0.0, %v2547
        %v2549 = vpop.f32.mrf.mxu0
        %v2550 = vadd.f32 0.0, %v2549
        %2551 = vdwg.mxu0
        %2552 = vmatpush.bf16.msra.mxu0 %v2532
        %2553 = vmatpush.bf16.msra.mxu0 %v2531
        %2554 = vmatpush.bf16.msra.mxu0 %v2530
        %2555 = vmatpush.bf16.msra.mxu0 %v2529
        %2556 = vmatpush.bf16.msra.mxu0 %v2528
        %2557 = vmatpush.bf16.msra.mxu0 %v2527
        %2558 = vmatpush.bf16.msra.mxu0 %v2526
        %2559 = vmatpush.bf16.msra.mxu0 %v2525
        %2560 = vmatmul.bf16.gmra.mxu0 %v2514
        %v2561 = vpop.f32.mrf.mxu0
        %v2562 = vadd.f32 %v2543, %v2561
        %v2563 = vpop.f32.mrf.mxu0
        %v2564 = vadd.f32 %v2545, %v2563
        %2565 = vmatmul.bf16.gmra.mxu0 %v2516
        %v2566 = vpop.f32.mrf.mxu0
        %v2567 = vadd.f32 %v2548, %v2566
        %v2568 = vpop.f32.mrf.mxu0
        %v2569 = vadd.f32 %v2550, %v2568
        %2570 = vdwg.mxu0
        %v2571 = vrcp.pop %v2512
        %v2572 = vmul.f32 %v2562, %v2571
        %v2573 = vmul.f32 %v2564, %v2571
        %v2574 = vmul.f32 %v2567, %v2571
        %v2575 = vmul.f32 %v2569, %v2571
        %v2576 = vld [vmem:[%s3] sm:$0xf]
        %v2577 = vld [vmem:[%s4] sm:$0xf]
        %2579 = vset.pattern.permute.xlu0 0
        %2580 = vperm.xlu0 %2579, %v2577
        %v2581 = vpop.permute.xlu0 %2580
        %2583 = vmatpush.msra.mxu0 %v2575
        %2584 = vmatpush.msra.mxu0 %v2574
        %2585 = vmatpush.msra.mxu0 %v2573
        %2586 = vmatpush.msra.mxu0 %v2572
        %2587 = vmatpush.msra.mxu0 %v2123
        %2588 = vmatpush.msra.mxu0 %v2122
        %2589 = vmatpush.msra.mxu0 %v2121
        %2590 = vmatpush.msra.mxu0 %v2120
        %2591 = vmatpush.msra.mxu0 %v1671
        %2592 = vmatpush.msra.mxu0 %v1670
        %2593 = vmatpush.msra.mxu0 %v1669
        %2594 = vmatpush.msra.mxu0 %v1668
        %2595 = vmatpush.msra.mxu0 %v1219
        %2596 = vmatpush.msra.mxu0 %v1218
        %2597 = vmatpush.msra.mxu0 %v1217
        %2598 = vmatpush.msra.mxu0 %v1216
        %2599 = vmatmul.f32.gmra.mxu0 %v2576
        %v2600 = vpop.f32.mrf.mxu0
        %v2601 = vadd.f32 %v2581, %v2600
        %2602 = vdwg.mxu0
        %2603 = vst [vmem:[%s254] sm:$0xf] %v2601
        %s2604 = sand.u32 %s158, 1
        %s2605 = scalar_lea.sflag [#allocation3], %s2604
        %s2606 = sand.u32 %s158, 1
        %s2607 = smul.addr %s2606, 4
        %s2608 = scalar_lea.vmem [#allocation2], %s2607
        // Predicated region
        $region41: #{tpu_custom_call.1} parent=39 // pred_check
          %p2609 = pneg %p168
        $region42: #{tpu_custom_call.1} parent=39 // pred_check_branch
          %2611 = sbr.rel (%p2609) target = $region44
        $region43: #{tpu_custom_call.1} parent=39 // pred_region
          %2613 = vsyncadd %s2605, 0
          %s2614 = smul.addr %s23, 2
          %s2615 = sadd.s32 %s24, %s2614
          %s2616 = smul.addr %s2615, 4
          %s2617 = scalar_lea.hbm %s5, %s2616
          %s2619 = sshll.u32 %s2608, 4
          %s2620 = int_to_ptr.vmem [resolvable:$true] %s2619
          %s2621 = sshll.u32 %s2617, 4
          %s2622 = int_to_ptr.hbm [resolvable:$true] %s2621
          %2624 = dma.vmem_to_hbm [thread:$0]  %s2620, 64, %s2622, %s2605
        $region44: #{tpu_custom_call.1} parent=39 // pred_fallthru
          _
      $region40: #{tpu_custom_call.1} parent=5 // pred_fallthru
        _
      %p2625 = scmp.le.s32.totalorder 2, %s14
      // Predicated region
      $region45: #{tpu_custom_call.1} parent=5 // pred_check
        %p2626 = pneg %p2625
      $region46: #{tpu_custom_call.1} parent=5 // pred_check_branch
        %2628 = sbr.rel (%p2626) target = $region48
      $region47: #{tpu_custom_call.1} parent=5 // pred_region
        %s2629 = ssub.s32 %s14, 2
        // Predicated region
        $region49: #{tpu_custom_call.1} parent=47 // pred_check
          %p2630 = pneg %p174
        $region50: #{tpu_custom_call.1} parent=47 // pred_check_branch
          %2632 = sbr.rel (%p2630) target = $region52
        $region51: #{tpu_custom_call.1} parent=47 // pred_region
          %s2633 = sand.u32 %s159, 1
          %s2634 = scalar_lea.sflag [#allocation3], %s2633
          %s2635 = sand.u32 %s159, 1
          %s2636 = smul.addr %s2635, 4
          %s2637 = scalar_lea.vmem [#allocation2], %s2636
          %2639 = dma.done %s2634, 64
        $region52: #{tpu_custom_call.1} parent=47 // pred_fallthru
          _
      $region48: #{tpu_custom_call.1} parent=5 // pred_fallthru
        _
    $region6: #{tpu_custom_call.1} parent=1 // loop_footer
      %s18 = sadd.s32 1, %s14
    $region7: #{tpu_custom_call.1} parent=1 // loop_footer_branch
      %13 = sbr.rel target = $region3
    $region8: #{tpu_custom_call.1} parent=1 // loop_exit
      _
    %2640 = vsyncpa [#allocation3], 1
    %s2641 = scalar_lea.sflag [#allocation3], 1
    %2642 = vsyncpa %s2641, 1

</llo_original>
